<compile_context>
chip_gen: v6e
topology: v6e:2x2x1
jax: 0.10.0
libtpu: 0.0.40
codegen_flags: <defaults>
</compile_context>

<pallas_src>
import functools

import jax
import jax.numpy as jnp
from jax.experimental import pallas as pl
from jax.experimental.pallas import tpu as pltpu


# --------------------------- fused Generator kernel --------------------------
def _generator_kernel(x_ref, n_ref,
                      w1_ref, b1_ref,
                      l1_wih_ref, l1_whh_ref, l1_b_ref,
                      l2_wih_ref, l2_whh_ref, l2_b_ref,
                      w2bd_ref, b2_ref,
                      out_ref, *, batch, p_len, q_len, hid):
    """All refs are full arrays resident in VMEM (no grid).

    x_ref:   (B*P, F)  batch-major flattened input rows   (row = b*P + t)
    n_ref:   (B*Q, F)  batch-major flattened noise rows   (row = b*Q + t)
    out_ref: (B, Q*F)  batch-major, lane-dense output (reshape to (B,Q,F) is free)
    LSTM weights/biases arrive with gate columns pre-permuted to (i, f, o, g).
    """
    B, P, Q, H = batch, p_len, q_len, hid

    # ---- Stage 1: ffn = Linear(F->H) + ReLU over all B*P rows at once -------
    h_act = jnp.maximum(
        jnp.dot(x_ref[...], w1_ref[...], preferred_element_type=jnp.float32)
        + b1_ref[...], 0.0)                                        # (B*P, H)

    # ---- Hoisted input projections (one matmul each, outside recurrence) ----
    gx1 = (jnp.dot(h_act, l1_wih_ref[...],
                   preferred_element_type=jnp.float32)
           + l1_b_ref[...])                                        # (B*P, 4H)
    gx2 = (jnp.dot(n_ref[...], l2_wih_ref[...],
                   preferred_element_type=jnp.float32)
           + l2_b_ref[...])                                        # (B*Q, 4H)

    # Gather per-timestep (B, 4H) gate slabs once, OFF the recurrence critical
    # path (row = b*T + t), so the serial loops see clean tile-aligned values.
    def per_step(gx, T):
        return [jnp.concatenate(
                    [gx[b * T + t: b * T + t + 1, :] for b in range(B)], axis=0)
                for t in range(T)]
    gx1_t = per_step(gx1, P)
    gx2_t = per_step(gx2, Q)

    whh1 = l1_whh_ref[...]
    whh2 = l2_whh_ref[...]

    def lstm_cell(g_in, h, c, whh):
        # g_in already contains x_t @ W_ih + (b_ih + b_hh).
        g = g_in + jnp.dot(h, whh, preferred_element_type=jnp.float32)  # (B, 4H)
        # Gates pre-permuted to (i, f, o, g): one sigmoid + one tanh per step.
        s = jax.nn.sigmoid(g[:, :3 * H])
        gg = jnp.tanh(g[:, 3 * H:])
        i = s[:, :H]
        f = s[:, H:2 * H]
        o = s[:, 2 * H:3 * H]
        c_new = f * c + i * gg
        h_new = o * jnp.tanh(c_new)
        return h_new, c_new

    # TODO(synk): hold W_hh in MXU weight registers across the unrolled loops
    # (pltpu.matmul_push_rhs / matmul_acc_lhs / matmul_pop) to avoid re-pushing
    # the (32,128) RHS every serial step; kept on jnp.dot for lowering safety.

    # ---- Stage 2: lstm1 recurrence (zero init; only final state needed) -----
    h = jnp.zeros((B, H), jnp.float32)
    c = jnp.zeros((B, H), jnp.float32)
    for t in range(P):                       # fully unrolled, static slices
        h, c = lstm_cell(gx1_t[t], h, c, whh1)

    # ---- Stage 3: lstm2 recurrence, collect the Q hidden states -------------
    hs = []
    for t in range(Q):
        h, c = lstm_cell(gx2_t[t], h, c, whh2)
        hs.append(h)

    # ---- Stage 4: batched ffn2 — one matmul against block-diag W2, one store
    h_lane = jnp.concatenate(hs, axis=1)                           # (B, Q*H)
    out_ref[...] = (jnp.dot(h_lane, w2bd_ref[...],
                            preferred_element_type=jnp.float32)
                    + b2_ref[...])                                 # (B, Q*F)


def generator_forward(kparams, x, noise):
    """x: (B, p, feats) f32; noise: (B, q, feats) f32 -> (B, q, feats) f32.

    `kparams` must come from prepare_kernel_params (gate-permuted weights,
    block-diagonal ffn2 weight). The only wrapper-side ops are bitcast-free
    reshapes — no transposes / copies feed or consume the custom call.
    """
    B, P, F = x.shape
    Q = noise.shape[1]
    H = kparams["w1"].shape[1]

    x_flat = x.reshape(B * P, F)        # contiguous merge of leading dims: free
    n_flat = noise.reshape(B * Q, F)    # free

    kern = functools.partial(_generator_kernel,
                             batch=B, p_len=P, q_len=Q, hid=H)
    vmem = pl.BlockSpec(memory_space=pltpu.MemorySpace.VMEM)
    out = pl.pallas_call(
        kern,
        out_shape=jax.ShapeDtypeStruct((B, Q * F), jnp.float32),
        in_specs=[vmem] * 12,
        out_specs=vmem,
    )(x_flat, n_flat,
      kparams["w1"], kparams["b1"],
      kparams["l1_wih"], kparams["l1_whh"], kparams["l1_b"],
      kparams["l2_wih"], kparams["l2_whh"], kparams["l2_b"],
      kparams["w2_bd"], kparams["b2_t"])

    return out.reshape(B, Q, F)         # contiguous split of minor dim: free

# Deliberately NO grid / tiling: total resident footprint is ~70 KB, orders of
# magnitude under even v7x's 64 MiB VMEM; a grid would only reintroduce the
# ~0.35 us/step overhead the fusion removed. A leading "parallel" grid axis is
# only worth adding on v7x if many independent sequences are batched.


# ------------------------------ parameters -----------------------------------
def init_params(key, feats, hid):
    """Canonical (PyTorch-ordered) parameters: gate order (i, f, g, o),
    weights stored transposed as (In, 4H), biases fused (b_ih + b_hh)."""
    ks = jax.random.split(key, 10)
    s = 0.1
    return {
        # ffn: Linear(feats -> hid)
        "w1": jax.random.normal(ks[0], (feats, hid), jnp.float32) * s,
        "b1": jax.random.normal(ks[1], (hid,), jnp.float32) * s,
        # lstm_1: input hid, hidden hid
        "l1_wih": jax.random.normal(ks[2], (hid, 4 * hid), jnp.float32) * s,
        "l1_whh": jax.random.normal(ks[3], (hid, 4 * hid), jnp.float32) * s,
        "l1_b": jax.random.normal(ks[4], (4 * hid,), jnp.float32) * s,
        # lstm_2: input feats, hidden hid
        "l2_wih": jax.random.normal(ks[5], (feats, 4 * hid), jnp.float32) * s,
        "l2_whh": jax.random.normal(ks[6], (hid, 4 * hid), jnp.float32) * s,
        "l2_b": jax.random.normal(ks[7], (4 * hid,), jnp.float32) * s,
        # ffn2: Linear(hid -> feats)
        "w2": jax.random.normal(ks[8], (hid, feats), jnp.float32) * s,
        "b2": jax.random.normal(ks[9], (feats,), jnp.float32) * s,
    }


def prepare_kernel_params(params, q_len):
    """One-time host-side weight preparation for the fused kernel:
      * permute LSTM gate columns (i,f,g,o) -> (i,f,o,g)
      * reshape biases to row vectors
      * build the block-diagonal ffn2 weight (Q*H, Q*F) and tiled bias
    Apply the same permutation when importing real PyTorch weights."""
    def permute_gates(w):                       # last dim is 4H
        i, f, g, o = jnp.split(w, 4, axis=-1)
        return jnp.concatenate([i, f, o, g], axis=-1)

    H = params["w1"].shape[1]
    F = params["w2"].shape[1]
    Q = q_len
    return {
        "w1": params["w1"],
        "b1": params["b1"].reshape(1, H),
        "l1_wih": permute_gates(params["l1_wih"]),
        "l1_whh": permute_gates(params["l1_whh"]),
        "l1_b": permute_gates(params["l1_b"].reshape(1, 4 * H)),
        "l2_wih": permute_gates(params["l2_wih"]),
        "l2_whh": permute_gates(params["l2_whh"]),
        "l2_b": permute_gates(params["l2_b"].reshape(1, 4 * H)),
        "w2_bd": jnp.kron(jnp.eye(Q, dtype=params["w2"].dtype), params["w2"]),
        "b2_t": jnp.tile(params["b2"], Q).reshape(1, Q * F),
    }


# ----------------------------- pure-JAX reference ----------------------------
def _lstm_ref(x_btf, wih, whh, b, h0, c0):
    def step(carry, x_t):
        h, c = carry
        gates = x_t @ wih + h @ whh + b
        i, f, g, o = jnp.split(gates, 4, axis=-1)
        i, f, o = jax.nn.sigmoid(i), jax.nn.sigmoid(f), jax.nn.sigmoid(o)
        g = jnp.tanh(g)
        c = f * c + i * g
        h = o * jnp.tanh(c)
        return (h, c), h

    (hT, cT), ys = jax.lax.scan(step, (h0, c0), jnp.transpose(x_btf, (1, 0, 2)))
    return jnp.transpose(ys, (1, 0, 2)), hT, cT


def generator_forward_ref(params, x, noise):
    B, P, F = x.shape
    H = params["w1"].shape[1]
    h = jnp.maximum(x @ params["w1"] + params["b1"], 0.0)
    zeros = jnp.zeros((B, H), jnp.float32)
    _, hT, cT = _lstm_ref(h, params["l1_wih"], params["l1_whh"],
                          params["l1_b"], zeros, zeros)
    y2, _, _ = _lstm_ref(noise, params["l2_wih"], params["l2_whh"],
                         params["l2_b"], hT, cT)
    return y2 @ params["w2"] + params["b2"]


# ---------------------------------- main --------------------------------------
if __name__ == "__main__":
    feature_size = 8
    hidden_dim = 32
    window_size = 8   # input sequence length p
    target_size = 4   # generated sequence length q
    batch = 2

    key = jax.random.PRNGKey(0)
    k_param, k_x, k_noise = jax.random.split(key, 3)

    params = init_params(k_param, feature_size, hidden_dim)
    kparams = prepare_kernel_params(params, target_size)   # one-time prep

    x = jax.random.normal(k_x, (batch, window_size, feature_size), jnp.float32)
    # torch.randn(B, q, feats) equivalent (deterministic here):
    noise = jax.random.normal(k_noise, (batch, target_size, feature_size),
                              jnp.float32)

    fwd = jax.jit(generator_forward)
    out = jax.block_until_ready(fwd(kparams, x, noise))
    assert out.shape == (batch, target_size, feature_size)

    ref = generator_forward_ref(params, x, noise)
    assert jnp.allclose(out, ref, atol=1e-4, rtol=1e-4), \
        f"mismatch: max err {jnp.max(jnp.abs(out - ref))}"

    print("KERNEL_OK")
</pallas_src>

<mosaic_0001>
module attributes {stable_mosaic.version = 11 : i64} {
  func.func @_generator_kernel(%arg0: memref<16x8xf32, #tpu.memory_space<vmem>>, %arg1: memref<8x8xf32, #tpu.memory_space<vmem>>, %arg2: memref<8x32xf32, #tpu.memory_space<vmem>>, %arg3: memref<1x32xf32, #tpu.memory_space<vmem>>, %arg4: memref<32x128xf32, #tpu.memory_space<vmem>>, %arg5: memref<32x128xf32, #tpu.memory_space<vmem>>, %arg6: memref<1x128xf32, #tpu.memory_space<vmem>>, %arg7: memref<8x128xf32, #tpu.memory_space<vmem>>, %arg8: memref<32x128xf32, #tpu.memory_space<vmem>>, %arg9: memref<1x128xf32, #tpu.memory_space<vmem>>, %arg10: memref<128x32xf32, #tpu.memory_space<vmem>>, %arg11: memref<1x32xf32, #tpu.memory_space<vmem>>, %arg12: memref<2x32xf32, #tpu.memory_space<vmem>>) attributes {dimension_semantics = [], scalar_prefetch = 0 : i64, scratch_operands = 0 : i64, tpu.core_type = #tpu.core_type<tc>} {
    %c0 = arith.constant 0 : index
    %c0_0 = arith.constant 0 : index
    %0 = vector.load %arg0[%c0, %c0_0] : memref<16x8xf32, #tpu.memory_space<vmem>>, vector<16x8xf32>
    %c0_1 = arith.constant 0 : index
    %c0_2 = arith.constant 0 : index
    %1 = vector.load %arg2[%c0_1, %c0_2] : memref<8x32xf32, #tpu.memory_space<vmem>>, vector<8x32xf32>
    %cst = arith.constant dense<0.000000e+00> : vector<16x32xf32>
    %2 = tpu.matmul %0, %1, %cst {dimension_numbers = #tpu.dot_dimension_numbers<[1], [0], [0], [1], [0, 0, 1, 1], [], []>} : vector<16x8xf32>, vector<8x32xf32>, vector<16x32xf32> -> vector<16x32xf32>
    %c0_3 = arith.constant 0 : index
    %c0_4 = arith.constant 0 : index
    %3 = vector.load %arg3[%c0_3, %c0_4] : memref<1x32xf32, #tpu.memory_space<vmem>>, vector<1x32xf32>
    %4 = vector.broadcast %3 : vector<1x32xf32> to vector<16x32xf32>
    %5 = arith.addf %2, %4 : vector<16x32xf32>
    %cst_5 = arith.constant 0.000000e+00 : f32
    %6 = vector.broadcast %cst_5 : f32 to vector<16x32xf32>
    %7 = arith.maximumf %5, %6 : vector<16x32xf32>
    %c0_6 = arith.constant 0 : index
    %c0_7 = arith.constant 0 : index
    %8 = vector.load %arg4[%c0_6, %c0_7] : memref<32x128xf32, #tpu.memory_space<vmem>>, vector<32x128xf32>
    %cst_8 = arith.constant dense<0.000000e+00> : vector<16x128xf32>
    %9 = tpu.matmul %7, %8, %cst_8 {dimension_numbers = #tpu.dot_dimension_numbers<[1], [0], [0], [1], [0, 0, 1, 1], [], []>} : vector<16x32xf32>, vector<32x128xf32>, vector<16x128xf32> -> vector<16x128xf32>
    %c0_9 = arith.constant 0 : index
    %c0_10 = arith.constant 0 : index
    %10 = vector.load %arg6[%c0_9, %c0_10] : memref<1x128xf32, #tpu.memory_space<vmem>>, vector<1x128xf32>
    %11 = vector.broadcast %10 : vector<1x128xf32> to vector<16x128xf32>
    %12 = arith.addf %9, %11 : vector<16x128xf32>
    %c0_11 = arith.constant 0 : index
    %c0_12 = arith.constant 0 : index
    %13 = vector.load %arg1[%c0_11, %c0_12] : memref<8x8xf32, #tpu.memory_space<vmem>>, vector<8x8xf32>
    %c0_13 = arith.constant 0 : index
    %c0_14 = arith.constant 0 : index
    %14 = vector.load %arg7[%c0_13, %c0_14] : memref<8x128xf32, #tpu.memory_space<vmem>>, vector<8x128xf32>
    %cst_15 = arith.constant dense<0.000000e+00> : vector<8x128xf32>
    %15 = tpu.matmul %13, %14, %cst_15 {dimension_numbers = #tpu.dot_dimension_numbers<[1], [0], [0], [1], [0, 0, 1, 1], [], []>} : vector<8x8xf32>, vector<8x128xf32>, vector<8x128xf32> -> vector<8x128xf32>
    %c0_16 = arith.constant 0 : index
    %c0_17 = arith.constant 0 : index
    %16 = vector.load %arg9[%c0_16, %c0_17] : memref<1x128xf32, #tpu.memory_space<vmem>>, vector<1x128xf32>
    %17 = vector.broadcast %16 : vector<1x128xf32> to vector<8x128xf32>
    %18 = arith.addf %15, %17 : vector<8x128xf32>
    %19 = vector.extract_strided_slice %12 {offsets = [0, 0], sizes = [1, 128], strides = [1, 1]} : vector<16x128xf32> to vector<1x128xf32>
    %20 = vector.extract_strided_slice %12 {offsets = [8, 0], sizes = [1, 128], strides = [1, 1]} : vector<16x128xf32> to vector<1x128xf32>
    %21 = tpu.concatenate %19, %20 in 0 : vector<1x128xf32>, vector<1x128xf32> -> vector<2x128xf32>
    %22 = vector.extract_strided_slice %12 {offsets = [1, 0], sizes = [1, 128], strides = [1, 1]} : vector<16x128xf32> to vector<1x128xf32>
    %23 = vector.extract_strided_slice %12 {offsets = [9, 0], sizes = [1, 128], strides = [1, 1]} : vector<16x128xf32> to vector<1x128xf32>
    %24 = tpu.concatenate %22, %23 in 0 : vector<1x128xf32>, vector<1x128xf32> -> vector<2x128xf32>
    %25 = vector.extract_strided_slice %12 {offsets = [2, 0], sizes = [1, 128], strides = [1, 1]} : vector<16x128xf32> to vector<1x128xf32>
    %26 = vector.extract_strided_slice %12 {offsets = [10, 0], sizes = [1, 128], strides = [1, 1]} : vector<16x128xf32> to vector<1x128xf32>
    %27 = tpu.concatenate %25, %26 in 0 : vector<1x128xf32>, vector<1x128xf32> -> vector<2x128xf32>
    %28 = vector.extract_strided_slice %12 {offsets = [3, 0], sizes = [1, 128], strides = [1, 1]} : vector<16x128xf32> to vector<1x128xf32>
    %29 = vector.extract_strided_slice %12 {offsets = [11, 0], sizes = [1, 128], strides = [1, 1]} : vector<16x128xf32> to vector<1x128xf32>
    %30 = tpu.concatenate %28, %29 in 0 : vector<1x128xf32>, vector<1x128xf32> -> vector<2x128xf32>
    %31 = vector.extract_strided_slice %12 {offsets = [4, 0], sizes = [1, 128], strides = [1, 1]} : vector<16x128xf32> to vector<1x128xf32>
    %32 = vector.extract_strided_slice %12 {offsets = [12, 0], sizes = [1, 128], strides = [1, 1]} : vector<16x128xf32> to vector<1x128xf32>
    %33 = tpu.concatenate %31, %32 in 0 : vector<1x128xf32>, vector<1x128xf32> -> vector<2x128xf32>
    %34 = vector.extract_strided_slice %12 {offsets = [5, 0], sizes = [1, 128], strides = [1, 1]} : vector<16x128xf32> to vector<1x128xf32>
    %35 = vector.extract_strided_slice %12 {offsets = [13, 0], sizes = [1, 128], strides = [1, 1]} : vector<16x128xf32> to vector<1x128xf32>
    %36 = tpu.concatenate %34, %35 in 0 : vector<1x128xf32>, vector<1x128xf32> -> vector<2x128xf32>
    %37 = vector.extract_strided_slice %12 {offsets = [6, 0], sizes = [1, 128], strides = [1, 1]} : vector<16x128xf32> to vector<1x128xf32>
    %38 = vector.extract_strided_slice %12 {offsets = [14, 0], sizes = [1, 128], strides = [1, 1]} : vector<16x128xf32> to vector<1x128xf32>
    %39 = tpu.concatenate %37, %38 in 0 : vector<1x128xf32>, vector<1x128xf32> -> vector<2x128xf32>
    %40 = vector.extract_strided_slice %12 {offsets = [7, 0], sizes = [1, 128], strides = [1, 1]} : vector<16x128xf32> to vector<1x128xf32>
    %41 = vector.extract_strided_slice %12 {offsets = [15, 0], sizes = [1, 128], strides = [1, 1]} : vector<16x128xf32> to vector<1x128xf32>
    %42 = tpu.concatenate %40, %41 in 0 : vector<1x128xf32>, vector<1x128xf32> -> vector<2x128xf32>
    %43 = vector.extract_strided_slice %18 {offsets = [0, 0], sizes = [1, 128], strides = [1, 1]} : vector<8x128xf32> to vector<1x128xf32>
    %44 = vector.extract_strided_slice %18 {offsets = [4, 0], sizes = [1, 128], strides = [1, 1]} : vector<8x128xf32> to vector<1x128xf32>
    %45 = tpu.concatenate %43, %44 in 0 : vector<1x128xf32>, vector<1x128xf32> -> vector<2x128xf32>
    %46 = vector.extract_strided_slice %18 {offsets = [1, 0], sizes = [1, 128], strides = [1, 1]} : vector<8x128xf32> to vector<1x128xf32>
    %47 = vector.extract_strided_slice %18 {offsets = [5, 0], sizes = [1, 128], strides = [1, 1]} : vector<8x128xf32> to vector<1x128xf32>
    %48 = tpu.concatenate %46, %47 in 0 : vector<1x128xf32>, vector<1x128xf32> -> vector<2x128xf32>
    %49 = vector.extract_strided_slice %18 {offsets = [2, 0], sizes = [1, 128], strides = [1, 1]} : vector<8x128xf32> to vector<1x128xf32>
    %50 = vector.extract_strided_slice %18 {offsets = [6, 0], sizes = [1, 128], strides = [1, 1]} : vector<8x128xf32> to vector<1x128xf32>
    %51 = tpu.concatenate %49, %50 in 0 : vector<1x128xf32>, vector<1x128xf32> -> vector<2x128xf32>
    %52 = vector.extract_strided_slice %18 {offsets = [3, 0], sizes = [1, 128], strides = [1, 1]} : vector<8x128xf32> to vector<1x128xf32>
    %53 = vector.extract_strided_slice %18 {offsets = [7, 0], sizes = [1, 128], strides = [1, 1]} : vector<8x128xf32> to vector<1x128xf32>
    %54 = tpu.concatenate %52, %53 in 0 : vector<1x128xf32>, vector<1x128xf32> -> vector<2x128xf32>
    %c0_18 = arith.constant 0 : index
    %c0_19 = arith.constant 0 : index
    %55 = vector.load %arg5[%c0_18, %c0_19] : memref<32x128xf32, #tpu.memory_space<vmem>>, vector<32x128xf32>
    %c0_20 = arith.constant 0 : index
    %c0_21 = arith.constant 0 : index
    %56 = vector.load %arg8[%c0_20, %c0_21] : memref<32x128xf32, #tpu.memory_space<vmem>>, vector<32x128xf32>
    %cst_22 = arith.constant 0.000000e+00 : f32
    %57 = vector.broadcast %cst_22 : f32 to vector<2x32xf32>
    %cst_23 = arith.constant 0.000000e+00 : f32
    %58 = vector.broadcast %cst_23 : f32 to vector<2x32xf32>
    %cst_24 = arith.constant dense<0.000000e+00> : vector<2x128xf32>
    %59 = tpu.matmul %57, %55, %cst_24 {dimension_numbers = #tpu.dot_dimension_numbers<[1], [0], [0], [1], [0, 0, 1, 1], [], []>} : vector<2x32xf32>, vector<32x128xf32>, vector<2x128xf32> -> vector<2x128xf32>
    %60 = arith.addf %21, %59 : vector<2x128xf32>
    %61 = vector.extract_strided_slice %60 {offsets = [0, 0], sizes = [2, 96], strides = [1, 1]} : vector<2x128xf32> to vector<2x96xf32>
    %62 = arith.negf %61 : vector<2x96xf32>
    %63 = math.exp %62 : vector<2x96xf32>
    %cst_25 = arith.constant 1.000000e+00 : f32
    %64 = vector.broadcast %cst_25 : f32 to vector<2x96xf32>
    %65 = arith.addf %64, %63 : vector<2x96xf32>
    %66 = arith.divf %64, %65 : vector<2x96xf32>
    %67 = vector.extract_strided_slice %60 {offsets = [0, 96], sizes = [2, 32], strides = [1, 1]} : vector<2x128xf32> to vector<2x32xf32>
    %68 = math.tanh %67 : vector<2x32xf32>
    %69 = vector.extract_strided_slice %66 {offsets = [0, 0], sizes = [2, 32], strides = [1, 1]} : vector<2x96xf32> to vector<2x32xf32>
    %70 = vector.extract_strided_slice %66 {offsets = [0, 32], sizes = [2, 32], strides = [1, 1]} : vector<2x96xf32> to vector<2x32xf32>
    %71 = vector.extract_strided_slice %66 {offsets = [0, 64], sizes = [2, 32], strides = [1, 1]} : vector<2x96xf32> to vector<2x32xf32>
    %72 = arith.mulf %70, %58 : vector<2x32xf32>
    %73 = arith.mulf %69, %68 : vector<2x32xf32>
    %74 = arith.addf %72, %73 : vector<2x32xf32>
    %75 = math.tanh %74 : vector<2x32xf32>
    %76 = arith.mulf %71, %75 : vector<2x32xf32>
    %cst_26 = arith.constant dense<0.000000e+00> : vector<2x128xf32>
    %77 = tpu.matmul %76, %55, %cst_26 {dimension_numbers = #tpu.dot_dimension_numbers<[1], [0], [0], [1], [0, 0, 1, 1], [], []>} : vector<2x32xf32>, vector<32x128xf32>, vector<2x128xf32> -> vector<2x128xf32>
    %78 = arith.addf %24, %77 : vector<2x128xf32>
    %79 = vector.extract_strided_slice %78 {offsets = [0, 0], sizes = [2, 96], strides = [1, 1]} : vector<2x128xf32> to vector<2x96xf32>
    %80 = arith.negf %79 : vector<2x96xf32>
    %81 = math.exp %80 : vector<2x96xf32>
    %cst_27 = arith.constant 1.000000e+00 : f32
    %82 = vector.broadcast %cst_27 : f32 to vector<2x96xf32>
    %83 = arith.addf %82, %81 : vector<2x96xf32>
    %84 = arith.divf %82, %83 : vector<2x96xf32>
    %85 = vector.extract_strided_slice %78 {offsets = [0, 96], sizes = [2, 32], strides = [1, 1]} : vector<2x128xf32> to vector<2x32xf32>
    %86 = math.tanh %85 : vector<2x32xf32>
    %87 = vector.extract_strided_slice %84 {offsets = [0, 0], sizes = [2, 32], strides = [1, 1]} : vector<2x96xf32> to vector<2x32xf32>
    %88 = vector.extract_strided_slice %84 {offsets = [0, 32], sizes = [2, 32], strides = [1, 1]} : vector<2x96xf32> to vector<2x32xf32>
    %89 = vector.extract_strided_slice %84 {offsets = [0, 64], sizes = [2, 32], strides = [1, 1]} : vector<2x96xf32> to vector<2x32xf32>
    %90 = arith.mulf %88, %74 : vector<2x32xf32>
    %91 = arith.mulf %87, %86 : vector<2x32xf32>
    %92 = arith.addf %90, %91 : vector<2x32xf32>
    %93 = math.tanh %92 : vector<2x32xf32>
    %94 = arith.mulf %89, %93 : vector<2x32xf32>
    %cst_28 = arith.constant dense<0.000000e+00> : vector<2x128xf32>
    %95 = tpu.matmul %94, %55, %cst_28 {dimension_numbers = #tpu.dot_dimension_numbers<[1], [0], [0], [1], [0, 0, 1, 1], [], []>} : vector<2x32xf32>, vector<32x128xf32>, vector<2x128xf32> -> vector<2x128xf32>
    %96 = arith.addf %27, %95 : vector<2x128xf32>
    %97 = vector.extract_strided_slice %96 {offsets = [0, 0], sizes = [2, 96], strides = [1, 1]} : vector<2x128xf32> to vector<2x96xf32>
    %98 = arith.negf %97 : vector<2x96xf32>
    %99 = math.exp %98 : vector<2x96xf32>
    %cst_29 = arith.constant 1.000000e+00 : f32
    %100 = vector.broadcast %cst_29 : f32 to vector<2x96xf32>
    %101 = arith.addf %100, %99 : vector<2x96xf32>
    %102 = arith.divf %100, %101 : vector<2x96xf32>
    %103 = vector.extract_strided_slice %96 {offsets = [0, 96], sizes = [2, 32], strides = [1, 1]} : vector<2x128xf32> to vector<2x32xf32>
    %104 = math.tanh %103 : vector<2x32xf32>
    %105 = vector.extract_strided_slice %102 {offsets = [0, 0], sizes = [2, 32], strides = [1, 1]} : vector<2x96xf32> to vector<2x32xf32>
    %106 = vector.extract_strided_slice %102 {offsets = [0, 32], sizes = [2, 32], strides = [1, 1]} : vector<2x96xf32> to vector<2x32xf32>
    %107 = vector.extract_strided_slice %102 {offsets = [0, 64], sizes = [2, 32], strides = [1, 1]} : vector<2x96xf32> to vector<2x32xf32>
    %108 = arith.mulf %106, %92 : vector<2x32xf32>
    %109 = arith.mulf %105, %104 : vector<2x32xf32>
    %110 = arith.addf %108, %109 : vector<2x32xf32>
    %111 = math.tanh %110 : vector<2x32xf32>
    %112 = arith.mulf %107, %111 : vector<2x32xf32>
    %cst_30 = arith.constant dense<0.000000e+00> : vector<2x128xf32>
    %113 = tpu.matmul %112, %55, %cst_30 {dimension_numbers = #tpu.dot_dimension_numbers<[1], [0], [0], [1], [0, 0, 1, 1], [], []>} : vector<2x32xf32>, vector<32x128xf32>, vector<2x128xf32> -> vector<2x128xf32>
    %114 = arith.addf %30, %113 : vector<2x128xf32>
    %115 = vector.extract_strided_slice %114 {offsets = [0, 0], sizes = [2, 96], strides = [1, 1]} : vector<2x128xf32> to vector<2x96xf32>
    %116 = arith.negf %115 : vector<2x96xf32>
    %117 = math.exp %116 : vector<2x96xf32>
    %cst_31 = arith.constant 1.000000e+00 : f32
    %118 = vector.broadcast %cst_31 : f32 to vector<2x96xf32>
    %119 = arith.addf %118, %117 : vector<2x96xf32>
    %120 = arith.divf %118, %119 : vector<2x96xf32>
    %121 = vector.extract_strided_slice %114 {offsets = [0, 96], sizes = [2, 32], strides = [1, 1]} : vector<2x128xf32> to vector<2x32xf32>
    %122 = math.tanh %121 : vector<2x32xf32>
    %123 = vector.extract_strided_slice %120 {offsets = [0, 0], sizes = [2, 32], strides = [1, 1]} : vector<2x96xf32> to vector<2x32xf32>
    %124 = vector.extract_strided_slice %120 {offsets = [0, 32], sizes = [2, 32], strides = [1, 1]} : vector<2x96xf32> to vector<2x32xf32>
    %125 = vector.extract_strided_slice %120 {offsets = [0, 64], sizes = [2, 32], strides = [1, 1]} : vector<2x96xf32> to vector<2x32xf32>
    %126 = arith.mulf %124, %110 : vector<2x32xf32>
    %127 = arith.mulf %123, %122 : vector<2x32xf32>
    %128 = arith.addf %126, %127 : vector<2x32xf32>
    %129 = math.tanh %128 : vector<2x32xf32>
    %130 = arith.mulf %125, %129 : vector<2x32xf32>
    %cst_32 = arith.constant dense<0.000000e+00> : vector<2x128xf32>
    %131 = tpu.matmul %130, %55, %cst_32 {dimension_numbers = #tpu.dot_dimension_numbers<[1], [0], [0], [1], [0, 0, 1, 1], [], []>} : vector<2x32xf32>, vector<32x128xf32>, vector<2x128xf32> -> vector<2x128xf32>
    %132 = arith.addf %33, %131 : vector<2x128xf32>
    %133 = vector.extract_strided_slice %132 {offsets = [0, 0], sizes = [2, 96], strides = [1, 1]} : vector<2x128xf32> to vector<2x96xf32>
    %134 = arith.negf %133 : vector<2x96xf32>
    %135 = math.exp %134 : vector<2x96xf32>
    %cst_33 = arith.constant 1.000000e+00 : f32
    %136 = vector.broadcast %cst_33 : f32 to vector<2x96xf32>
    %137 = arith.addf %136, %135 : vector<2x96xf32>
    %138 = arith.divf %136, %137 : vector<2x96xf32>
    %139 = vector.extract_strided_slice %132 {offsets = [0, 96], sizes = [2, 32], strides = [1, 1]} : vector<2x128xf32> to vector<2x32xf32>
    %140 = math.tanh %139 : vector<2x32xf32>
    %141 = vector.extract_strided_slice %138 {offsets = [0, 0], sizes = [2, 32], strides = [1, 1]} : vector<2x96xf32> to vector<2x32xf32>
    %142 = vector.extract_strided_slice %138 {offsets = [0, 32], sizes = [2, 32], strides = [1, 1]} : vector<2x96xf32> to vector<2x32xf32>
    %143 = vector.extract_strided_slice %138 {offsets = [0, 64], sizes = [2, 32], strides = [1, 1]} : vector<2x96xf32> to vector<2x32xf32>
    %144 = arith.mulf %142, %128 : vector<2x32xf32>
    %145 = arith.mulf %141, %140 : vector<2x32xf32>
    %146 = arith.addf %144, %145 : vector<2x32xf32>
    %147 = math.tanh %146 : vector<2x32xf32>
    %148 = arith.mulf %143, %147 : vector<2x32xf32>
    %cst_34 = arith.constant dense<0.000000e+00> : vector<2x128xf32>
    %149 = tpu.matmul %148, %55, %cst_34 {dimension_numbers = #tpu.dot_dimension_numbers<[1], [0], [0], [1], [0, 0, 1, 1], [], []>} : vector<2x32xf32>, vector<32x128xf32>, vector<2x128xf32> -> vector<2x128xf32>
    %150 = arith.addf %36, %149 : vector<2x128xf32>
    %151 = vector.extract_strided_slice %150 {offsets = [0, 0], sizes = [2, 96], strides = [1, 1]} : vector<2x128xf32> to vector<2x96xf32>
    %152 = arith.negf %151 : vector<2x96xf32>
    %153 = math.exp %152 : vector<2x96xf32>
    %cst_35 = arith.constant 1.000000e+00 : f32
    %154 = vector.broadcast %cst_35 : f32 to vector<2x96xf32>
    %155 = arith.addf %154, %153 : vector<2x96xf32>
    %156 = arith.divf %154, %155 : vector<2x96xf32>
    %157 = vector.extract_strided_slice %150 {offsets = [0, 96], sizes = [2, 32], strides = [1, 1]} : vector<2x128xf32> to vector<2x32xf32>
    %158 = math.tanh %157 : vector<2x32xf32>
    %159 = vector.extract_strided_slice %156 {offsets = [0, 0], sizes = [2, 32], strides = [1, 1]} : vector<2x96xf32> to vector<2x32xf32>
    %160 = vector.extract_strided_slice %156 {offsets = [0, 32], sizes = [2, 32], strides = [1, 1]} : vector<2x96xf32> to vector<2x32xf32>
    %161 = vector.extract_strided_slice %156 {offsets = [0, 64], sizes = [2, 32], strides = [1, 1]} : vector<2x96xf32> to vector<2x32xf32>
    %162 = arith.mulf %160, %146 : vector<2x32xf32>
    %163 = arith.mulf %159, %158 : vector<2x32xf32>
    %164 = arith.addf %162, %163 : vector<2x32xf32>
    %165 = math.tanh %164 : vector<2x32xf32>
    %166 = arith.mulf %161, %165 : vector<2x32xf32>
    %cst_36 = arith.constant dense<0.000000e+00> : vector<2x128xf32>
    %167 = tpu.matmul %166, %55, %cst_36 {dimension_numbers = #tpu.dot_dimension_numbers<[1], [0], [0], [1], [0, 0, 1, 1], [], []>} : vector<2x32xf32>, vector<32x128xf32>, vector<2x128xf32> -> vector<2x128xf32>
    %168 = arith.addf %39, %167 : vector<2x128xf32>
    %169 = vector.extract_strided_slice %168 {offsets = [0, 0], sizes = [2, 96], strides = [1, 1]} : vector<2x128xf32> to vector<2x96xf32>
    %170 = arith.negf %169 : vector<2x96xf32>
    %171 = math.exp %170 : vector<2x96xf32>
    %cst_37 = arith.constant 1.000000e+00 : f32
    %172 = vector.broadcast %cst_37 : f32 to vector<2x96xf32>
    %173 = arith.addf %172, %171 : vector<2x96xf32>
    %174 = arith.divf %172, %173 : vector<2x96xf32>
    %175 = vector.extract_strided_slice %168 {offsets = [0, 96], sizes = [2, 32], strides = [1, 1]} : vector<2x128xf32> to vector<2x32xf32>
    %176 = math.tanh %175 : vector<2x32xf32>
    %177 = vector.extract_strided_slice %174 {offsets = [0, 0], sizes = [2, 32], strides = [1, 1]} : vector<2x96xf32> to vector<2x32xf32>
    %178 = vector.extract_strided_slice %174 {offsets = [0, 32], sizes = [2, 32], strides = [1, 1]} : vector<2x96xf32> to vector<2x32xf32>
    %179 = vector.extract_strided_slice %174 {offsets = [0, 64], sizes = [2, 32], strides = [1, 1]} : vector<2x96xf32> to vector<2x32xf32>
    %180 = arith.mulf %178, %164 : vector<2x32xf32>
    %181 = arith.mulf %177, %176 : vector<2x32xf32>
    %182 = arith.addf %180, %181 : vector<2x32xf32>
    %183 = math.tanh %182 : vector<2x32xf32>
    %184 = arith.mulf %179, %183 : vector<2x32xf32>
    %cst_38 = arith.constant dense<0.000000e+00> : vector<2x128xf32>
    %185 = tpu.matmul %184, %55, %cst_38 {dimension_numbers = #tpu.dot_dimension_numbers<[1], [0], [0], [1], [0, 0, 1, 1], [], []>} : vector<2x32xf32>, vector<32x128xf32>, vector<2x128xf32> -> vector<2x128xf32>
    %186 = arith.addf %42, %185 : vector<2x128xf32>
    %187 = vector.extract_strided_slice %186 {offsets = [0, 0], sizes = [2, 96], strides = [1, 1]} : vector<2x128xf32> to vector<2x96xf32>
    %188 = arith.negf %187 : vector<2x96xf32>
    %189 = math.exp %188 : vector<2x96xf32>
    %cst_39 = arith.constant 1.000000e+00 : f32
    %190 = vector.broadcast %cst_39 : f32 to vector<2x96xf32>
    %191 = arith.addf %190, %189 : vector<2x96xf32>
    %192 = arith.divf %190, %191 : vector<2x96xf32>
    %193 = vector.extract_strided_slice %186 {offsets = [0, 96], sizes = [2, 32], strides = [1, 1]} : vector<2x128xf32> to vector<2x32xf32>
    %194 = math.tanh %193 : vector<2x32xf32>
    %195 = vector.extract_strided_slice %192 {offsets = [0, 0], sizes = [2, 32], strides = [1, 1]} : vector<2x96xf32> to vector<2x32xf32>
    %196 = vector.extract_strided_slice %192 {offsets = [0, 32], sizes = [2, 32], strides = [1, 1]} : vector<2x96xf32> to vector<2x32xf32>
    %197 = vector.extract_strided_slice %192 {offsets = [0, 64], sizes = [2, 32], strides = [1, 1]} : vector<2x96xf32> to vector<2x32xf32>
    %198 = arith.mulf %196, %182 : vector<2x32xf32>
    %199 = arith.mulf %195, %194 : vector<2x32xf32>
    %200 = arith.addf %198, %199 : vector<2x32xf32>
    %201 = math.tanh %200 : vector<2x32xf32>
    %202 = arith.mulf %197, %201 : vector<2x32xf32>
    %cst_40 = arith.constant dense<0.000000e+00> : vector<2x128xf32>
    %203 = tpu.matmul %202, %56, %cst_40 {dimension_numbers = #tpu.dot_dimension_numbers<[1], [0], [0], [1], [0, 0, 1, 1], [], []>} : vector<2x32xf32>, vector<32x128xf32>, vector<2x128xf32> -> vector<2x128xf32>
    %204 = arith.addf %45, %203 : vector<2x128xf32>
    %205 = vector.extract_strided_slice %204 {offsets = [0, 0], sizes = [2, 96], strides = [1, 1]} : vector<2x128xf32> to vector<2x96xf32>
    %206 = arith.negf %205 : vector<2x96xf32>
    %207 = math.exp %206 : vector<2x96xf32>
    %cst_41 = arith.constant 1.000000e+00 : f32
    %208 = vector.broadcast %cst_41 : f32 to vector<2x96xf32>
    %209 = arith.addf %208, %207 : vector<2x96xf32>
    %210 = arith.divf %208, %209 : vector<2x96xf32>
    %211 = vector.extract_strided_slice %204 {offsets = [0, 96], sizes = [2, 32], strides = [1, 1]} : vector<2x128xf32> to vector<2x32xf32>
    %212 = math.tanh %211 : vector<2x32xf32>
    %213 = vector.extract_strided_slice %210 {offsets = [0, 0], sizes = [2, 32], strides = [1, 1]} : vector<2x96xf32> to vector<2x32xf32>
    %214 = vector.extract_strided_slice %210 {offsets = [0, 32], sizes = [2, 32], strides = [1, 1]} : vector<2x96xf32> to vector<2x32xf32>
    %215 = vector.extract_strided_slice %210 {offsets = [0, 64], sizes = [2, 32], strides = [1, 1]} : vector<2x96xf32> to vector<2x32xf32>
    %216 = arith.mulf %214, %200 : vector<2x32xf32>
    %217 = arith.mulf %213, %212 : vector<2x32xf32>
    %218 = arith.addf %216, %217 : vector<2x32xf32>
    %219 = math.tanh %218 : vector<2x32xf32>
    %220 = arith.mulf %215, %219 : vector<2x32xf32>
    %cst_42 = arith.constant dense<0.000000e+00> : vector<2x128xf32>
    %221 = tpu.matmul %220, %56, %cst_42 {dimension_numbers = #tpu.dot_dimension_numbers<[1], [0], [0], [1], [0, 0, 1, 1], [], []>} : vector<2x32xf32>, vector<32x128xf32>, vector<2x128xf32> -> vector<2x128xf32>
    %222 = arith.addf %48, %221 : vector<2x128xf32>
    %223 = vector.extract_strided_slice %222 {offsets = [0, 0], sizes = [2, 96], strides = [1, 1]} : vector<2x128xf32> to vector<2x96xf32>
    %224 = arith.negf %223 : vector<2x96xf32>
    %225 = math.exp %224 : vector<2x96xf32>
    %cst_43 = arith.constant 1.000000e+00 : f32
    %226 = vector.broadcast %cst_43 : f32 to vector<2x96xf32>
    %227 = arith.addf %226, %225 : vector<2x96xf32>
    %228 = arith.divf %226, %227 : vector<2x96xf32>
    %229 = vector.extract_strided_slice %222 {offsets = [0, 96], sizes = [2, 32], strides = [1, 1]} : vector<2x128xf32> to vector<2x32xf32>
    %230 = math.tanh %229 : vector<2x32xf32>
    %231 = vector.extract_strided_slice %228 {offsets = [0, 0], sizes = [2, 32], strides = [1, 1]} : vector<2x96xf32> to vector<2x32xf32>
    %232 = vector.extract_strided_slice %228 {offsets = [0, 32], sizes = [2, 32], strides = [1, 1]} : vector<2x96xf32> to vector<2x32xf32>
    %233 = vector.extract_strided_slice %228 {offsets = [0, 64], sizes = [2, 32], strides = [1, 1]} : vector<2x96xf32> to vector<2x32xf32>
    %234 = arith.mulf %232, %218 : vector<2x32xf32>
    %235 = arith.mulf %231, %230 : vector<2x32xf32>
    %236 = arith.addf %234, %235 : vector<2x32xf32>
    %237 = math.tanh %236 : vector<2x32xf32>
    %238 = arith.mulf %233, %237 : vector<2x32xf32>
    %cst_44 = arith.constant dense<0.000000e+00> : vector<2x128xf32>
    %239 = tpu.matmul %238, %56, %cst_44 {dimension_numbers = #tpu.dot_dimension_numbers<[1], [0], [0], [1], [0, 0, 1, 1], [], []>} : vector<2x32xf32>, vector<32x128xf32>, vector<2x128xf32> -> vector<2x128xf32>
    %240 = arith.addf %51, %239 : vector<2x128xf32>
    %241 = vector.extract_strided_slice %240 {offsets = [0, 0], sizes = [2, 96], strides = [1, 1]} : vector<2x128xf32> to vector<2x96xf32>
    %242 = arith.negf %241 : vector<2x96xf32>
    %243 = math.exp %242 : vector<2x96xf32>
    %cst_45 = arith.constant 1.000000e+00 : f32
    %244 = vector.broadcast %cst_45 : f32 to vector<2x96xf32>
    %245 = arith.addf %244, %243 : vector<2x96xf32>
    %246 = arith.divf %244, %245 : vector<2x96xf32>
    %247 = vector.extract_strided_slice %240 {offsets = [0, 96], sizes = [2, 32], strides = [1, 1]} : vector<2x128xf32> to vector<2x32xf32>
    %248 = math.tanh %247 : vector<2x32xf32>
    %249 = vector.extract_strided_slice %246 {offsets = [0, 0], sizes = [2, 32], strides = [1, 1]} : vector<2x96xf32> to vector<2x32xf32>
    %250 = vector.extract_strided_slice %246 {offsets = [0, 32], sizes = [2, 32], strides = [1, 1]} : vector<2x96xf32> to vector<2x32xf32>
    %251 = vector.extract_strided_slice %246 {offsets = [0, 64], sizes = [2, 32], strides = [1, 1]} : vector<2x96xf32> to vector<2x32xf32>
    %252 = arith.mulf %250, %236 : vector<2x32xf32>
    %253 = arith.mulf %249, %248 : vector<2x32xf32>
    %254 = arith.addf %252, %253 : vector<2x32xf32>
    %255 = math.tanh %254 : vector<2x32xf32>
    %256 = arith.mulf %251, %255 : vector<2x32xf32>
    %cst_46 = arith.constant dense<0.000000e+00> : vector<2x128xf32>
    %257 = tpu.matmul %256, %56, %cst_46 {dimension_numbers = #tpu.dot_dimension_numbers<[1], [0], [0], [1], [0, 0, 1, 1], [], []>} : vector<2x32xf32>, vector<32x128xf32>, vector<2x128xf32> -> vector<2x128xf32>
    %258 = arith.addf %54, %257 : vector<2x128xf32>
    %259 = vector.extract_strided_slice %258 {offsets = [0, 0], sizes = [2, 96], strides = [1, 1]} : vector<2x128xf32> to vector<2x96xf32>
    %260 = arith.negf %259 : vector<2x96xf32>
    %261 = math.exp %260 : vector<2x96xf32>
    %cst_47 = arith.constant 1.000000e+00 : f32
    %262 = vector.broadcast %cst_47 : f32 to vector<2x96xf32>
    %263 = arith.addf %262, %261 : vector<2x96xf32>
    %264 = arith.divf %262, %263 : vector<2x96xf32>
    %265 = vector.extract_strided_slice %258 {offsets = [0, 96], sizes = [2, 32], strides = [1, 1]} : vector<2x128xf32> to vector<2x32xf32>
    %266 = math.tanh %265 : vector<2x32xf32>
    %267 = vector.extract_strided_slice %264 {offsets = [0, 0], sizes = [2, 32], strides = [1, 1]} : vector<2x96xf32> to vector<2x32xf32>
    %268 = vector.extract_strided_slice %264 {offsets = [0, 32], sizes = [2, 32], strides = [1, 1]} : vector<2x96xf32> to vector<2x32xf32>
    %269 = vector.extract_strided_slice %264 {offsets = [0, 64], sizes = [2, 32], strides = [1, 1]} : vector<2x96xf32> to vector<2x32xf32>
    %270 = arith.mulf %268, %254 : vector<2x32xf32>
    %271 = arith.mulf %267, %266 : vector<2x32xf32>
    %272 = arith.addf %270, %271 : vector<2x32xf32>
    %273 = math.tanh %272 : vector<2x32xf32>
    %274 = arith.mulf %269, %273 : vector<2x32xf32>
    %275 = tpu.concatenate %220, %238, %256, %274 in 1 : vector<2x32xf32>, vector<2x32xf32>, vector<2x32xf32>, vector<2x32xf32> -> vector<2x128xf32>
    %c0_48 = arith.constant 0 : index
    %c0_49 = arith.constant 0 : index
    %276 = vector.load %arg10[%c0_48, %c0_49] : memref<128x32xf32, #tpu.memory_space<vmem>>, vector<128x32xf32>
    %cst_50 = arith.constant dense<0.000000e+00> : vector<2x32xf32>
    %277 = tpu.matmul %275, %276, %cst_50 {dimension_numbers = #tpu.dot_dimension_numbers<[1], [0], [0], [1], [0, 0, 1, 1], [], []>} : vector<2x128xf32>, vector<128x32xf32>, vector<2x32xf32> -> vector<2x32xf32>
    %c0_51 = arith.constant 0 : index
    %c0_52 = arith.constant 0 : index
    %278 = vector.load %arg11[%c0_51, %c0_52] : memref<1x32xf32, #tpu.memory_space<vmem>>, vector<1x32xf32>
    %279 = vector.broadcast %278 : vector<1x32xf32> to vector<2x32xf32>
    %280 = arith.addf %277, %279 : vector<2x32xf32>
    %c0_53 = arith.constant 0 : index
    %c0_54 = arith.constant 0 : index
    %281 = vector.load %arg12[%c0_53, %c0_54] : memref<2x32xf32, #tpu.memory_space<vmem>>, vector<2x32xf32>
    tpu.vector_store %arg12[%c0_53, %c0_54], %280 {strides = array<i32>} : memref<2x32xf32, #tpu.memory_space<vmem>>, vector<2x32xf32>,
    return
  }
}

</mosaic_0001>

<llo_original>
// kernel: generator_forward.1
$region0: #{generator_forward.1}
  #allocation0 [shape = 'u32[]', space=smem, size = 0x4, offset = 0x4, fixed_abs, tag = 'smem constant byte address 0x4 - core index']
  #allocation1 [shape = 'u32[144,128]{1,0:T(1,128)}', space=vmem, size = 0x12000, scoped, tag = 'internal scratch']
  %s0 = inlined_call_operand.vmem [shape: f32[16,8], index: 0, kind: input, shape index: {}]
  %s1 = inlined_call_operand.vmem [shape: f32[8,8], index: 1, kind: input, shape index: {}]
  %s2 = inlined_call_operand.vmem [shape: f32[8,32], index: 2, kind: input, shape index: {}]
  %s3 = inlined_call_operand.vmem [shape: f32[1,32], index: 3, kind: input, shape index: {}]
  %s4 = inlined_call_operand.vmem [shape: f32[32,128], index: 4, kind: input, shape index: {}]
  %s5 = inlined_call_operand.vmem [shape: f32[32,128], index: 5, kind: input, shape index: {}]
  %s6 = inlined_call_operand.vmem [shape: f32[1,128], index: 6, kind: input, shape index: {}]
  %s7 = inlined_call_operand.vmem [shape: f32[8,128], index: 7, kind: input, shape index: {}]
  %s8 = inlined_call_operand.vmem [shape: f32[32,128], index: 8, kind: input, shape index: {}]
  %s9 = inlined_call_operand.vmem [shape: f32[1,128], index: 9, kind: input, shape index: {}]
  %s10 = inlined_call_operand.vmem [shape: f32[128,32], index: 10, kind: input, shape index: {}]
  %s11 = inlined_call_operand.vmem [shape: f32[1,32], index: 11, kind: input, shape index: {}]
  %s12 = inlined_call_operand.vmem [shape: f32[2,32], index: 12, kind: output, shape index: {}]
  %s13 = sld [smem:[#allocation0]]
  $region58: #{generator_forward.1} parent=0
    _
  %s15 = ssub.s32 1, %s13
  %s16 = scalar_select 0, %s15, %s13
  // Predicated region
  $region2: #{generator_forward.1} parent=0 // pred_check
    _
  $region3: #{generator_forward.1} parent=0 // pred_check_branch
    %18 = sbr.rel (0) target = $region5
  $region4: #{generator_forward.1} parent=0 // pred_region
    _
  $region5: #{generator_forward.1} parent=0 // pred_fallthru
    _
  // Predicated region
  $region6: #{generator_forward.1} parent=0 // pred_check
    _
  $region7: #{generator_forward.1} parent=0 // pred_check_branch
    %20 = sbr.rel (0) target = $region9
  $region8: #{generator_forward.1} parent=0 // pred_region
    _
  $region9: #{generator_forward.1} parent=0 // pred_fallthru
    _
  // Predicated region
  $region10: #{generator_forward.1} parent=0 // pred_check
    _
  $region11: #{generator_forward.1} parent=0 // pred_check_branch
    %22 = sbr.rel (0) target = $region13
  $region12: #{generator_forward.1} parent=0 // pred_region
    _
  $region13: #{generator_forward.1} parent=0 // pred_fallthru
    _
  // Predicated region
  $region14: #{generator_forward.1} parent=0 // pred_check
    _
  $region15: #{generator_forward.1} parent=0 // pred_check_branch
    %24 = sbr.rel (0) target = $region17
  $region16: #{generator_forward.1} parent=0 // pred_region
    _
  $region17: #{generator_forward.1} parent=0 // pred_fallthru
    _
  // Predicated region
  $region18: #{generator_forward.1} parent=0 // pred_check
    _
  $region19: #{generator_forward.1} parent=0 // pred_check_branch
    %26 = sbr.rel (0) target = $region21
  $region20: #{generator_forward.1} parent=0 // pred_region
    _
  $region21: #{generator_forward.1} parent=0 // pred_fallthru
    _
  // Predicated region
  $region22: #{generator_forward.1} parent=0 // pred_check
    _
  $region23: #{generator_forward.1} parent=0 // pred_check_branch
    %28 = sbr.rel (0) target = $region25
  $region24: #{generator_forward.1} parent=0 // pred_region
    _
  $region25: #{generator_forward.1} parent=0 // pred_fallthru
    _
  // Predicated region
  $region26: #{generator_forward.1} parent=0 // pred_check
    _
  $region27: #{generator_forward.1} parent=0 // pred_check_branch
    %30 = sbr.rel (0) target = $region29
  $region28: #{generator_forward.1} parent=0 // pred_region
    _
  $region29: #{generator_forward.1} parent=0 // pred_fallthru
    _
  // Predicated region
  $region30: #{generator_forward.1} parent=0 // pred_check
    _
  $region31: #{generator_forward.1} parent=0 // pred_check_branch
    %32 = sbr.rel (0) target = $region33
  $region32: #{generator_forward.1} parent=0 // pred_region
    _
  $region33: #{generator_forward.1} parent=0 // pred_fallthru
    _
  // Predicated region
  $region34: #{generator_forward.1} parent=0 // pred_check
    _
  $region35: #{generator_forward.1} parent=0 // pred_check_branch
    %34 = sbr.rel (0) target = $region37
  $region36: #{generator_forward.1} parent=0 // pred_region
    _
  $region37: #{generator_forward.1} parent=0 // pred_fallthru
    _
  // Predicated region
  $region38: #{generator_forward.1} parent=0 // pred_check
    _
  $region39: #{generator_forward.1} parent=0 // pred_check_branch
    %36 = sbr.rel (0) target = $region41
  $region40: #{generator_forward.1} parent=0 // pred_region
    _
  $region41: #{generator_forward.1} parent=0 // pred_fallthru
    _
  // Predicated region
  $region42: #{generator_forward.1} parent=0 // pred_check
    _
  $region43: #{generator_forward.1} parent=0 // pred_check_branch
    %38 = sbr.rel (0) target = $region45
  $region44: #{generator_forward.1} parent=0 // pred_region
    _
  $region45: #{generator_forward.1} parent=0 // pred_fallthru
    _
  // Predicated region
  $region46: #{generator_forward.1} parent=0 // pred_check
    _
  $region47: #{generator_forward.1} parent=0 // pred_check_branch
    %40 = sbr.rel (0) target = $region49
  $region48: #{generator_forward.1} parent=0 // pred_region
    _
  $region49: #{generator_forward.1} parent=0 // pred_fallthru
    _
  %v41 = vld [vmem:[%s0] sm:$0xff]
  %v42 = vld [vmem:[%s0 + $0x8] sm:$0xff]
  %v43 = vld [vmem:[%s2] sm:$0xff]
  %v44 = vld [vmem:[%s3] sm:$0x1]
  %v46 = vlaneseq
  %v47 = vshrl.u32 %v46, 7
  %v48 = vsub.s32 0, %v47
  %v49 = vrot.slane %v44, %v48
  %vm51 = vcmask 64512
  %v53 = vsel %vm51, %v41, 0
  %v56 = vsel %vm51, %v42, 0
  %58 = vmatprep.subr.mxu0 0.0
  %59 = vmatpush1.msra.mxu0 0.0
  %60 = vmatprep.subr.mxu0 0.0
  %61 = vmatpush1.msra.mxu0 0.0
  %62 = vmatprep.subr.mxu0 0.0
  %63 = vmatpush1.msra.mxu0 0.0
  %64 = vmatprep.subr.mxu0 0.0
  %65 = vmatpush1.msra.mxu0 0.0
  %66 = vmatprep.subr.mxu0 0.0
  %67 = vmatpush1.msra.mxu0 0.0
  %68 = vmatprep.subr.mxu0 0.0
  %69 = vmatpush1.msra.mxu0 0.0
  %70 = vmatprep.subr.mxu0 0.0
  %71 = vmatpush1.msra.mxu0 0.0
  %72 = vmatprep.subr.mxu0 0.0
  %73 = vmatpush1.msra.mxu0 0.0
  %74 = vmatprep.subr.mxu0 0.0
  %75 = vmatpush1.msra.mxu0 0.0
  %76 = vmatprep.subr.mxu0 0.0
  %77 = vmatpush1.msra.mxu0 0.0
  %78 = vmatprep.subr.mxu0 0.0
  %79 = vmatpush1.msra.mxu0 0.0
  %80 = vmatprep.subr.mxu0 0.0
  %81 = vmatpush1.msra.mxu0 0.0
  %82 = vmatprep.subr.mxu0 0.0
  %83 = vmatpush1.msra.mxu0 0.0
  %84 = vmatprep.subr.mxu0 0.0
  %85 = vmatpush1.msra.mxu0 0.0
  %86 = vmatprep.subr.mxu0 0.0
  %87 = vmatpush1.msra.mxu0 0.0
  %88 = vmatprep.subr.mxu0 0.0
  %89 = vmatpush1.msra.mxu0 %v43
  %90 = vmatprep.subr.mxu0 0.0
  %91 = vmatpush2.msra.mxu0 0.0
  %92 = vmatprep.subr.mxu0 0.0
  %93 = vmatpush2.msra.mxu0 0.0
  %94 = vmatprep.subr.mxu0 0.0
  %95 = vmatpush2.msra.mxu0 0.0
  %96 = vmatprep.subr.mxu0 0.0
  %97 = vmatpush2.msra.mxu0 0.0
  %98 = vmatprep.subr.mxu0 0.0
  %99 = vmatpush2.msra.mxu0 0.0
  %100 = vmatprep.subr.mxu0 0.0
  %101 = vmatpush2.msra.mxu0 0.0
  %102 = vmatprep.subr.mxu0 0.0
  %103 = vmatpush2.msra.mxu0 0.0
  %104 = vmatprep.subr.mxu0 0.0
  %105 = vmatpush2.msra.mxu0 0.0
  %106 = vmatprep.subr.mxu0 0.0
  %107 = vmatpush2.msra.mxu0 0.0
  %108 = vmatprep.subr.mxu0 0.0
  %109 = vmatpush2.msra.mxu0 0.0
  %110 = vmatprep.subr.mxu0 0.0
  %111 = vmatpush2.msra.mxu0 0.0
  %112 = vmatprep.subr.mxu0 0.0
  %113 = vmatpush2.msra.mxu0 0.0
  %114 = vmatprep.subr.mxu0 0.0
  %115 = vmatpush2.msra.mxu0 0.0
  %116 = vmatprep.subr.mxu0 0.0
  %117 = vmatpush2.msra.mxu0 0.0
  %118 = vmatprep.subr.mxu0 0.0
  %119 = vmatpush2.msra.mxu0 0.0
  %120 = vmatprep.subr.mxu0 0.0
  %121 = vmatpush2.msra.mxu0 0.0
  %122 = vmatprep.mubr.f32.mxu0 0.0
  %123 = vmatmul.mubr.f32.gmra.mxu0 %v53
  %v124 = vpop.f32.mrf.mxu0
  %v125 = vadd.f32 %v49, %v124
  %v126 = vpop.f32.mrf.mxu0
  %127 = vmatprep.mubr.f32.mxu0 0.0
  %128 = vmatmul.mubr.f32.gmra.mxu0 %v56
  %v129 = vpop.f32.mrf.mxu0
  %v130 = vadd.f32 %v49, %v129
  %v131 = vpop.f32.mrf.mxu0
  %132 = vdwg.mxu0
  %v133 = vmax.f32 %v125, 0.0
  %v134 = vmax.f32 %v130, 0.0
  %v135 = vld [vmem:[%s4] sm:$0xff]
  %v136 = vld [vmem:[%s4 + $0x8] sm:$0xff]
  %v137 = vld [vmem:[%s4 + $0x10] sm:$0xff]
  %v138 = vld [vmem:[%s4 + $0x18] sm:$0xff]
  %v139 = vld [vmem:[%s6] sm:$0x1]
  %v141 = vlaneseq
  %v142 = vshrl.u32 %v141, 7
  %v143 = vsub.s32 0, %v142
  %v144 = vrot.slane %v139, %v143
  %vm146 = vcmask 261120
  %v148 = vsel %vm146, %v133, 0
  %v151 = vsel %vm146, %v134, 0
  %153 = vmatprep.subr.mxu0 0.0
  %154 = vmatpush1.msra.mxu0 0.0
  %155 = vmatprep.subr.mxu0 0.0
  %156 = vmatpush1.msra.mxu0 0.0
  %157 = vmatprep.subr.mxu0 0.0
  %158 = vmatpush1.msra.mxu0 0.0
  %159 = vmatprep.subr.mxu0 0.0
  %160 = vmatpush1.msra.mxu0 0.0
  %161 = vmatprep.subr.mxu0 0.0
  %162 = vmatpush1.msra.mxu0 0.0
  %163 = vmatprep.subr.mxu0 0.0
  %164 = vmatpush1.msra.mxu0 0.0
  %165 = vmatprep.subr.mxu0 0.0
  %166 = vmatpush1.msra.mxu0 0.0
  %167 = vmatprep.subr.mxu0 0.0
  %168 = vmatpush1.msra.mxu0 0.0
  %169 = vmatprep.subr.mxu0 0.0
  %170 = vmatpush1.msra.mxu0 0.0
  %171 = vmatprep.subr.mxu0 0.0
  %172 = vmatpush1.msra.mxu0 0.0
  %173 = vmatprep.subr.mxu0 0.0
  %174 = vmatpush1.msra.mxu0 0.0
  %175 = vmatprep.subr.mxu0 0.0
  %176 = vmatpush1.msra.mxu0 0.0
  %177 = vmatprep.subr.mxu0 0.0
  %178 = vmatpush1.msra.mxu0 %v138
  %179 = vmatprep.subr.mxu0 0.0
  %180 = vmatpush1.msra.mxu0 %v137
  %181 = vmatprep.subr.mxu0 0.0
  %182 = vmatpush1.msra.mxu0 %v136
  %183 = vmatprep.subr.mxu0 0.0
  %184 = vmatpush1.msra.mxu0 %v135
  %185 = vmatprep.subr.mxu0 0.0
  %186 = vmatpush2.msra.mxu0 0.0
  %187 = vmatprep.subr.mxu0 0.0
  %188 = vmatpush2.msra.mxu0 0.0
  %189 = vmatprep.subr.mxu0 0.0
  %190 = vmatpush2.msra.mxu0 0.0
  %191 = vmatprep.subr.mxu0 0.0
  %192 = vmatpush2.msra.mxu0 0.0
  %193 = vmatprep.subr.mxu0 0.0
  %194 = vmatpush2.msra.mxu0 0.0
  %195 = vmatprep.subr.mxu0 0.0
  %196 = vmatpush2.msra.mxu0 0.0
  %197 = vmatprep.subr.mxu0 0.0
  %198 = vmatpush2.msra.mxu0 0.0
  %199 = vmatprep.subr.mxu0 0.0
  %200 = vmatpush2.msra.mxu0 0.0
  %201 = vmatprep.subr.mxu0 0.0
  %202 = vmatpush2.msra.mxu0 0.0
  %203 = vmatprep.subr.mxu0 0.0
  %204 = vmatpush2.msra.mxu0 0.0
  %205 = vmatprep.subr.mxu0 0.0
  %206 = vmatpush2.msra.mxu0 0.0
  %207 = vmatprep.subr.mxu0 0.0
  %208 = vmatpush2.msra.mxu0 0.0
  %209 = vmatprep.subr.mxu0 0.0
  %210 = vmatpush2.msra.mxu0 0.0
  %211 = vmatprep.subr.mxu0 0.0
  %212 = vmatpush2.msra.mxu0 0.0
  %213 = vmatprep.subr.mxu0 0.0
  %214 = vmatpush2.msra.mxu0 0.0
  %215 = vmatprep.subr.mxu0 0.0
  %216 = vmatpush2.msra.mxu0 0.0
  %217 = vmatprep.mubr.f32.mxu0 0.0
  %218 = vmatmul.mubr.f32.gmra.mxu0 %v148
  %v219 = vpop.f32.mrf.mxu0
  %v220 = vadd.f32 %v144, %v219
  %v221 = vpop.f32.mrf.mxu0
  %222 = vmatprep.mubr.f32.mxu0 0.0
  %223 = vmatmul.mubr.f32.gmra.mxu0 %v151
  %v224 = vpop.f32.mrf.mxu0
  %v225 = vadd.f32 %v144, %v224
  %v226 = vpop.f32.mrf.mxu0
  %227 = vdwg.mxu0
  %v228 = vld [vmem:[%s1] sm:$0xff]
  %v229 = vld [vmem:[%s7] sm:$0xff]
  %v230 = vld [vmem:[%s9] sm:$0x1]
  %v232 = vlaneseq
  %v233 = vshrl.u32 %v232, 7
  %v234 = vsub.s32 0, %v233
  %v235 = vrot.slane %v230, %v234
  %v238 = vsel %vm51, %v228, 0
  %240 = vmatprep.subr.mxu0 0.0
  %241 = vmatpush1.msra.mxu0 0.0
  %242 = vmatprep.subr.mxu0 0.0
  %243 = vmatpush1.msra.mxu0 0.0
  %244 = vmatprep.subr.mxu0 0.0
  %245 = vmatpush1.msra.mxu0 0.0
  %246 = vmatprep.subr.mxu0 0.0
  %247 = vmatpush1.msra.mxu0 0.0
  %248 = vmatprep.subr.mxu0 0.0
  %249 = vmatpush1.msra.mxu0 0.0
  %250 = vmatprep.subr.mxu0 0.0
  %251 = vmatpush1.msra.mxu0 0.0
  %252 = vmatprep.subr.mxu0 0.0
  %253 = vmatpush1.msra.mxu0 0.0
  %254 = vmatprep.subr.mxu0 0.0
  %255 = vmatpush1.msra.mxu0 0.0
  %256 = vmatprep.subr.mxu0 0.0
  %257 = vmatpush1.msra.mxu0 0.0
  %258 = vmatprep.subr.mxu0 0.0
  %259 = vmatpush1.msra.mxu0 0.0
  %260 = vmatprep.subr.mxu0 0.0
  %261 = vmatpush1.msra.mxu0 0.0
  %262 = vmatprep.subr.mxu0 0.0
  %263 = vmatpush1.msra.mxu0 0.0
  %264 = vmatprep.subr.mxu0 0.0
  %265 = vmatpush1.msra.mxu0 0.0
  %266 = vmatprep.subr.mxu0 0.0
  %267 = vmatpush1.msra.mxu0 0.0
  %268 = vmatprep.subr.mxu0 0.0
  %269 = vmatpush1.msra.mxu0 0.0
  %270 = vmatprep.subr.mxu0 0.0
  %271 = vmatpush1.msra.mxu0 %v229
  %272 = vmatprep.subr.mxu0 0.0
  %273 = vmatpush2.msra.mxu0 0.0
  %274 = vmatprep.subr.mxu0 0.0
  %275 = vmatpush2.msra.mxu0 0.0
  %276 = vmatprep.subr.mxu0 0.0
  %277 = vmatpush2.msra.mxu0 0.0
  %278 = vmatprep.subr.mxu0 0.0
  %279 = vmatpush2.msra.mxu0 0.0
  %280 = vmatprep.subr.mxu0 0.0
  %281 = vmatpush2.msra.mxu0 0.0
  %282 = vmatprep.subr.mxu0 0.0
  %283 = vmatpush2.msra.mxu0 0.0
  %284 = vmatprep.subr.mxu0 0.0
  %285 = vmatpush2.msra.mxu0 0.0
  %286 = vmatprep.subr.mxu0 0.0
  %287 = vmatpush2.msra.mxu0 0.0
  %288 = vmatprep.subr.mxu0 0.0
  %289 = vmatpush2.msra.mxu0 0.0
  %290 = vmatprep.subr.mxu0 0.0
  %291 = vmatpush2.msra.mxu0 0.0
  %292 = vmatprep.subr.mxu0 0.0
  %293 = vmatpush2.msra.mxu0 0.0
  %294 = vmatprep.subr.mxu0 0.0
  %295 = vmatpush2.msra.mxu0 0.0
  %296 = vmatprep.subr.mxu0 0.0
  %297 = vmatpush2.msra.mxu0 0.0
  %298 = vmatprep.subr.mxu0 0.0
  %299 = vmatpush2.msra.mxu0 0.0
  %300 = vmatprep.subr.mxu0 0.0
  %301 = vmatpush2.msra.mxu0 0.0
  %302 = vmatprep.subr.mxu0 0.0
  %303 = vmatpush2.msra.mxu0 0.0
  %304 = vmatprep.mubr.f32.mxu0 0.0
  %305 = vmatmul.mubr.f32.gmra.mxu0 %v238
  %v306 = vpop.f32.mrf.mxu0
  %v307 = vadd.f32 %v235, %v306
  %v308 = vpop.f32.mrf.mxu0
  %309 = vdwg.mxu0
  %v311 = vrot.slane %v225, 7
  %vm313 = vcmask 1040384
  %v314 = vsel %vm313, %v220, %v311
  %v316 = vrot.slane %v220, 1
  %v318 = vsel %vm313, %v316, %v225
  %v319 = vrot.slane %v220, 2
  %v321 = vrot.slane %v225, 1
  %v323 = vsel %vm313, %v319, %v321
  %v324 = vrot.slane %v220, 3
  %v326 = vrot.slane %v225, 2
  %v328 = vsel %vm313, %v324, %v326
  %v329 = vrot.slane %v220, 4
  %v331 = vrot.slane %v225, 3
  %v333 = vsel %vm313, %v329, %v331
  %v334 = vrot.slane %v220, 5
  %v336 = vrot.slane %v225, 4
  %v338 = vsel %vm313, %v334, %v336
  %v339 = vrot.slane %v220, 6
  %v341 = vrot.slane %v225, 5
  %v343 = vsel %vm313, %v339, %v341
  %v344 = vrot.slane %v220, 7
  %v346 = vrot.slane %v225, 6
  %v348 = vsel %vm313, %v344, %v346
  %v350 = vrot.slane %v307, 3
  %v352 = vsel %vm313, %v307, %v350
  %v353 = vrot.slane %v307, 1
  %v355 = vrot.slane %v307, 4
  %v357 = vsel %vm313, %v353, %v355
  %v358 = vrot.slane %v307, 2
  %v360 = vrot.slane %v307, 5
  %v362 = vsel %vm313, %v358, %v360
  %v363 = vrot.slane %v307, 6
  %v365 = vsel %vm313, %v350, %v363
  %v366 = vld [vmem:[%s5] sm:$0xff]
  %v367 = vld [vmem:[%s5 + $0x8] sm:$0xff]
  %v368 = vld [vmem:[%s5 + $0x10] sm:$0xff]
  %v369 = vld [vmem:[%s5 + $0x18] sm:$0xff]
  %v370 = vld [vmem:[%s8] sm:$0xff]
  %v371 = vld [vmem:[%s8 + $0x8] sm:$0xff]
  %v372 = vld [vmem:[%s8 + $0x10] sm:$0xff]
  %v373 = vld [vmem:[%s8 + $0x18] sm:$0xff]
  %v375 = vsel %vm146, 0.0, 0
  %377 = vmatprep.subr.mxu0 0.0
  %378 = vmatpush1.msra.mxu0 0.0
  %379 = vmatprep.subr.mxu0 0.0
  %380 = vmatpush1.msra.mxu0 0.0
  %381 = vmatprep.subr.mxu0 0.0
  %382 = vmatpush1.msra.mxu0 0.0
  %383 = vmatprep.subr.mxu0 0.0
  %384 = vmatpush1.msra.mxu0 0.0
  %385 = vmatprep.subr.mxu0 0.0
  %386 = vmatpush1.msra.mxu0 0.0
  %387 = vmatprep.subr.mxu0 0.0
  %388 = vmatpush1.msra.mxu0 0.0
  %389 = vmatprep.subr.mxu0 0.0
  %390 = vmatpush1.msra.mxu0 0.0
  %391 = vmatprep.subr.mxu0 0.0
  %392 = vmatpush1.msra.mxu0 0.0
  %393 = vmatprep.subr.mxu0 0.0
  %394 = vmatpush1.msra.mxu0 0.0
  %395 = vmatprep.subr.mxu0 0.0
  %396 = vmatpush1.msra.mxu0 0.0
  %397 = vmatprep.subr.mxu0 0.0
  %398 = vmatpush1.msra.mxu0 0.0
  %399 = vmatprep.subr.mxu0 0.0
  %400 = vmatpush1.msra.mxu0 0.0
  %401 = vmatprep.subr.mxu0 0.0
  %402 = vmatpush1.msra.mxu0 %v369
  %403 = vmatprep.subr.mxu0 0.0
  %404 = vmatpush1.msra.mxu0 %v368
  %405 = vmatprep.subr.mxu0 0.0
  %406 = vmatpush1.msra.mxu0 %v367
  %407 = vmatprep.subr.mxu0 0.0
  %408 = vmatpush1.msra.mxu0 %v366
  %409 = vmatprep.subr.mxu0 0.0
  %410 = vmatpush2.msra.mxu0 0.0
  %411 = vmatprep.subr.mxu0 0.0
  %412 = vmatpush2.msra.mxu0 0.0
  %413 = vmatprep.subr.mxu0 0.0
  %414 = vmatpush2.msra.mxu0 0.0
  %415 = vmatprep.subr.mxu0 0.0
  %416 = vmatpush2.msra.mxu0 0.0
  %417 = vmatprep.subr.mxu0 0.0
  %418 = vmatpush2.msra.mxu0 0.0
  %419 = vmatprep.subr.mxu0 0.0
  %420 = vmatpush2.msra.mxu0 0.0
  %421 = vmatprep.subr.mxu0 0.0
  %422 = vmatpush2.msra.mxu0 0.0
  %423 = vmatprep.subr.mxu0 0.0
  %424 = vmatpush2.msra.mxu0 0.0
  %425 = vmatprep.subr.mxu0 0.0
  %426 = vmatpush2.msra.mxu0 0.0
  %427 = vmatprep.subr.mxu0 0.0
  %428 = vmatpush2.msra.mxu0 0.0
  %429 = vmatprep.subr.mxu0 0.0
  %430 = vmatpush2.msra.mxu0 0.0
  %431 = vmatprep.subr.mxu0 0.0
  %432 = vmatpush2.msra.mxu0 0.0
  %433 = vmatprep.subr.mxu0 0.0
  %434 = vmatpush2.msra.mxu0 0.0
  %435 = vmatprep.subr.mxu0 0.0
  %436 = vmatpush2.msra.mxu0 0.0
  %437 = vmatprep.subr.mxu0 0.0
  %438 = vmatpush2.msra.mxu0 0.0
  %439 = vmatprep.subr.mxu0 0.0
  %440 = vmatpush2.msra.mxu0 0.0
  %441 = vmatprep.mubr.f32.mxu0 0.0
  %442 = vmatmul.mubr.f32.gmra.mxu0 %v375
  %v443 = vpop.f32.mrf.mxu0
  %v444 = vadd.f32 0.0, %v443
  %v445 = vpop.f32.mrf.mxu0
  %446 = vdwg.mxu0
  %v447 = vadd.f32 %v314, %v444
  %v448 = vxor.u32 %v447, 2147483648
  %v449 = vmul.f32 %v448, 1.442695
  %v450 = vpow.pop %v449
  %v451 = vadd.f32 %v450, 1.0
  %v452 = vrcp.pop %v451
  %v453 = vmul.f32 1.0, %v452
  %v454 = vtanh.pop %v447
  %v455 = vmul.f32 %v453, 0.0
  %457 = vrot.lane.b32.xlu0 %v454, 32
  %v458 = vpop.permute.xlu0 %457
  %v460 = vmul.f32 %v453, %v458
  %462 = vrot.lane.b32.xlu0 %v460, 32
  %v463 = vpop.permute.xlu0 %462
  %v465 = vadd.f32 %v455, %v463
  %v466 = vtanh.pop %v465
  %468 = vrot.lane.b32.xlu0 %v466, 32
  %v469 = vpop.permute.xlu0 %468
  %v471 = vmul.f32 %v453, %v469
  %473 = vrot.lane.b32.xlu0 %v471, 64
  %v474 = vpop.permute.xlu0 %473
  %v475 = vsel %vm146, %v474, 0
  %477 = vmatprep.subr.mxu0 0.0
  %478 = vmatpush1.msra.mxu0 0.0
  %479 = vmatprep.subr.mxu0 0.0
  %480 = vmatpush1.msra.mxu0 0.0
  %481 = vmatprep.subr.mxu0 0.0
  %482 = vmatpush1.msra.mxu0 0.0
  %483 = vmatprep.subr.mxu0 0.0
  %484 = vmatpush1.msra.mxu0 0.0
  %485 = vmatprep.subr.mxu0 0.0
  %486 = vmatpush1.msra.mxu0 0.0
  %487 = vmatprep.subr.mxu0 0.0
  %488 = vmatpush1.msra.mxu0 0.0
  %489 = vmatprep.subr.mxu0 0.0
  %490 = vmatpush1.msra.mxu0 0.0
  %491 = vmatprep.subr.mxu0 0.0
  %492 = vmatpush1.msra.mxu0 0.0
  %493 = vmatprep.subr.mxu0 0.0
  %494 = vmatpush1.msra.mxu0 0.0
  %495 = vmatprep.subr.mxu0 0.0
  %496 = vmatpush1.msra.mxu0 0.0
  %497 = vmatprep.subr.mxu0 0.0
  %498 = vmatpush1.msra.mxu0 0.0
  %499 = vmatprep.subr.mxu0 0.0
  %500 = vmatpush1.msra.mxu0 0.0
  %501 = vmatprep.subr.mxu0 0.0
  %502 = vmatpush1.msra.mxu0 %v369
  %503 = vmatprep.subr.mxu0 0.0
  %504 = vmatpush1.msra.mxu0 %v368
  %505 = vmatprep.subr.mxu0 0.0
  %506 = vmatpush1.msra.mxu0 %v367
  %507 = vmatprep.subr.mxu0 0.0
  %508 = vmatpush1.msra.mxu0 %v366
  %509 = vmatprep.subr.mxu0 0.0
  %510 = vmatpush2.msra.mxu0 0.0
  %511 = vmatprep.subr.mxu0 0.0
  %512 = vmatpush2.msra.mxu0 0.0
  %513 = vmatprep.subr.mxu0 0.0
  %514 = vmatpush2.msra.mxu0 0.0
  %515 = vmatprep.subr.mxu0 0.0
  %516 = vmatpush2.msra.mxu0 0.0
  %517 = vmatprep.subr.mxu0 0.0
  %518 = vmatpush2.msra.mxu0 0.0
  %519 = vmatprep.subr.mxu0 0.0
  %520 = vmatpush2.msra.mxu0 0.0
  %521 = vmatprep.subr.mxu0 0.0
  %522 = vmatpush2.msra.mxu0 0.0
  %523 = vmatprep.subr.mxu0 0.0
  %524 = vmatpush2.msra.mxu0 0.0
  %525 = vmatprep.subr.mxu0 0.0
  %526 = vmatpush2.msra.mxu0 0.0
  %527 = vmatprep.subr.mxu0 0.0
  %528 = vmatpush2.msra.mxu0 0.0
  %529 = vmatprep.subr.mxu0 0.0
  %530 = vmatpush2.msra.mxu0 0.0
  %531 = vmatprep.subr.mxu0 0.0
  %532 = vmatpush2.msra.mxu0 0.0
  %533 = vmatprep.subr.mxu0 0.0
  %534 = vmatpush2.msra.mxu0 0.0
  %535 = vmatprep.subr.mxu0 0.0
  %536 = vmatpush2.msra.mxu0 0.0
  %537 = vmatprep.subr.mxu0 0.0
  %538 = vmatpush2.msra.mxu0 0.0
  %539 = vmatprep.subr.mxu0 0.0
  %540 = vmatpush2.msra.mxu0 0.0
  %541 = vmatprep.mubr.f32.mxu0 0.0
  %542 = vmatmul.mubr.f32.gmra.mxu0 %v475
  %v543 = vpop.f32.mrf.mxu0
  %v544 = vadd.f32 0.0, %v543
  %v545 = vpop.f32.mrf.mxu0
  %546 = vdwg.mxu0
  %v547 = vadd.f32 %v318, %v544
  %v548 = vxor.u32 %v547, 2147483648
  %v549 = vmul.f32 %v548, 1.442695
  %v550 = vpow.pop %v549
  %v551 = vadd.f32 %v550, 1.0
  %v552 = vrcp.pop %v551
  %v553 = vmul.f32 1.0, %v552
  %v554 = vtanh.pop %v547
  %v555 = vmul.f32 %v553, %v465
  %557 = vrot.lane.b32.xlu0 %v554, 32
  %v558 = vpop.permute.xlu0 %557
  %v560 = vmul.f32 %v553, %v558
  %562 = vrot.lane.b32.xlu0 %v560, 32
  %v563 = vpop.permute.xlu0 %562
  %v565 = vadd.f32 %v555, %v563
  %v566 = vtanh.pop %v565
  %568 = vrot.lane.b32.xlu0 %v566, 32
  %v569 = vpop.permute.xlu0 %568
  %v571 = vmul.f32 %v553, %v569
  %573 = vrot.lane.b32.xlu0 %v571, 64
  %v574 = vpop.permute.xlu0 %573
  %v575 = vsel %vm146, %v574, 0
  %577 = vmatprep.subr.mxu0 0.0
  %578 = vmatpush1.msra.mxu0 0.0
  %579 = vmatprep.subr.mxu0 0.0
  %580 = vmatpush1.msra.mxu0 0.0
  %581 = vmatprep.subr.mxu0 0.0
  %582 = vmatpush1.msra.mxu0 0.0
  %583 = vmatprep.subr.mxu0 0.0
  %584 = vmatpush1.msra.mxu0 0.0
  %585 = vmatprep.subr.mxu0 0.0
  %586 = vmatpush1.msra.mxu0 0.0
  %587 = vmatprep.subr.mxu0 0.0
  %588 = vmatpush1.msra.mxu0 0.0
  %589 = vmatprep.subr.mxu0 0.0
  %590 = vmatpush1.msra.mxu0 0.0
  %591 = vmatprep.subr.mxu0 0.0
  %592 = vmatpush1.msra.mxu0 0.0
  %593 = vmatprep.subr.mxu0 0.0
  %594 = vmatpush1.msra.mxu0 0.0
  %595 = vmatprep.subr.mxu0 0.0
  %596 = vmatpush1.msra.mxu0 0.0
  %597 = vmatprep.subr.mxu0 0.0
  %598 = vmatpush1.msra.mxu0 0.0
  %599 = vmatprep.subr.mxu0 0.0
  %600 = vmatpush1.msra.mxu0 0.0
  %601 = vmatprep.subr.mxu0 0.0
  %602 = vmatpush1.msra.mxu0 %v369
  %603 = vmatprep.subr.mxu0 0.0
  %604 = vmatpush1.msra.mxu0 %v368
  %605 = vmatprep.subr.mxu0 0.0
  %606 = vmatpush1.msra.mxu0 %v367
  %607 = vmatprep.subr.mxu0 0.0
  %608 = vmatpush1.msra.mxu0 %v366
  %609 = vmatprep.subr.mxu0 0.0
  %610 = vmatpush2.msra.mxu0 0.0
  %611 = vmatprep.subr.mxu0 0.0
  %612 = vmatpush2.msra.mxu0 0.0
  %613 = vmatprep.subr.mxu0 0.0
  %614 = vmatpush2.msra.mxu0 0.0
  %615 = vmatprep.subr.mxu0 0.0
  %616 = vmatpush2.msra.mxu0 0.0
  %617 = vmatprep.subr.mxu0 0.0
  %618 = vmatpush2.msra.mxu0 0.0
  %619 = vmatprep.subr.mxu0 0.0
  %620 = vmatpush2.msra.mxu0 0.0
  %621 = vmatprep.subr.mxu0 0.0
  %622 = vmatpush2.msra.mxu0 0.0
  %623 = vmatprep.subr.mxu0 0.0
  %624 = vmatpush2.msra.mxu0 0.0
  %625 = vmatprep.subr.mxu0 0.0
  %626 = vmatpush2.msra.mxu0 0.0
  %627 = vmatprep.subr.mxu0 0.0
  %628 = vmatpush2.msra.mxu0 0.0
  %629 = vmatprep.subr.mxu0 0.0
  %630 = vmatpush2.msra.mxu0 0.0
  %631 = vmatprep.subr.mxu0 0.0
  %632 = vmatpush2.msra.mxu0 0.0
  %633 = vmatprep.subr.mxu0 0.0
  %634 = vmatpush2.msra.mxu0 0.0
  %635 = vmatprep.subr.mxu0 0.0
  %636 = vmatpush2.msra.mxu0 0.0
  %637 = vmatprep.subr.mxu0 0.0
  %638 = vmatpush2.msra.mxu0 0.0
  %639 = vmatprep.subr.mxu0 0.0
  %640 = vmatpush2.msra.mxu0 0.0
  %641 = vmatprep.mubr.f32.mxu0 0.0
  %642 = vmatmul.mubr.f32.gmra.mxu0 %v575
  %v643 = vpop.f32.mrf.mxu0
  %v644 = vadd.f32 0.0, %v643
  %v645 = vpop.f32.mrf.mxu0
  %646 = vdwg.mxu0
  %v647 = vadd.f32 %v323, %v644
  %v648 = vxor.u32 %v647, 2147483648
  %v649 = vmul.f32 %v648, 1.442695
  %v650 = vpow.pop %v649
  %v651 = vadd.f32 %v650, 1.0
  %v652 = vrcp.pop %v651
  %v653 = vmul.f32 1.0, %v652
  %v654 = vtanh.pop %v647
  %v655 = vmul.f32 %v653, %v565
  %657 = vrot.lane.b32.xlu0 %v654, 32
  %v658 = vpop.permute.xlu0 %657
  %v660 = vmul.f32 %v653, %v658
  %662 = vrot.lane.b32.xlu0 %v660, 32
  %v663 = vpop.permute.xlu0 %662
  %v665 = vadd.f32 %v655, %v663
  %v666 = vtanh.pop %v665
  %668 = vrot.lane.b32.xlu0 %v666, 32
  %v669 = vpop.permute.xlu0 %668
  %v671 = vmul.f32 %v653, %v669
  %673 = vrot.lane.b32.xlu0 %v671, 64
  %v674 = vpop.permute.xlu0 %673
  %v675 = vsel %vm146, %v674, 0
  %677 = vmatprep.subr.mxu0 0.0
  %678 = vmatpush1.msra.mxu0 0.0
  %679 = vmatprep.subr.mxu0 0.0
  %680 = vmatpush1.msra.mxu0 0.0
  %681 = vmatprep.subr.mxu0 0.0
  %682 = vmatpush1.msra.mxu0 0.0
  %683 = vmatprep.subr.mxu0 0.0
  %684 = vmatpush1.msra.mxu0 0.0
  %685 = vmatprep.subr.mxu0 0.0
  %686 = vmatpush1.msra.mxu0 0.0
  %687 = vmatprep.subr.mxu0 0.0
  %688 = vmatpush1.msra.mxu0 0.0
  %689 = vmatprep.subr.mxu0 0.0
  %690 = vmatpush1.msra.mxu0 0.0
  %691 = vmatprep.subr.mxu0 0.0
  %692 = vmatpush1.msra.mxu0 0.0
  %693 = vmatprep.subr.mxu0 0.0
  %694 = vmatpush1.msra.mxu0 0.0
  %695 = vmatprep.subr.mxu0 0.0
  %696 = vmatpush1.msra.mxu0 0.0
  %697 = vmatprep.subr.mxu0 0.0
  %698 = vmatpush1.msra.mxu0 0.0
  %699 = vmatprep.subr.mxu0 0.0
  %700 = vmatpush1.msra.mxu0 0.0
  %701 = vmatprep.subr.mxu0 0.0
  %702 = vmatpush1.msra.mxu0 %v369
  %703 = vmatprep.subr.mxu0 0.0
  %704 = vmatpush1.msra.mxu0 %v368
  %705 = vmatprep.subr.mxu0 0.0
  %706 = vmatpush1.msra.mxu0 %v367
  %707 = vmatprep.subr.mxu0 0.0
  %708 = vmatpush1.msra.mxu0 %v366
  %709 = vmatprep.subr.mxu0 0.0
  %710 = vmatpush2.msra.mxu0 0.0
  %711 = vmatprep.subr.mxu0 0.0
  %712 = vmatpush2.msra.mxu0 0.0
  %713 = vmatprep.subr.mxu0 0.0
  %714 = vmatpush2.msra.mxu0 0.0
  %715 = vmatprep.subr.mxu0 0.0
  %716 = vmatpush2.msra.mxu0 0.0
  %717 = vmatprep.subr.mxu0 0.0
  %718 = vmatpush2.msra.mxu0 0.0
  %719 = vmatprep.subr.mxu0 0.0
  %720 = vmatpush2.msra.mxu0 0.0
  %721 = vmatprep.subr.mxu0 0.0
  %722 = vmatpush2.msra.mxu0 0.0
  %723 = vmatprep.subr.mxu0 0.0
  %724 = vmatpush2.msra.mxu0 0.0
  %725 = vmatprep.subr.mxu0 0.0
  %726 = vmatpush2.msra.mxu0 0.0
  %727 = vmatprep.subr.mxu0 0.0
  %728 = vmatpush2.msra.mxu0 0.0
  %729 = vmatprep.subr.mxu0 0.0
  %730 = vmatpush2.msra.mxu0 0.0
  %731 = vmatprep.subr.mxu0 0.0
  %732 = vmatpush2.msra.mxu0 0.0
  %733 = vmatprep.subr.mxu0 0.0
  %734 = vmatpush2.msra.mxu0 0.0
  %735 = vmatprep.subr.mxu0 0.0
  %736 = vmatpush2.msra.mxu0 0.0
  %737 = vmatprep.subr.mxu0 0.0
  %738 = vmatpush2.msra.mxu0 0.0
  %739 = vmatprep.subr.mxu0 0.0
  %740 = vmatpush2.msra.mxu0 0.0
  %741 = vmatprep.mubr.f32.mxu0 0.0
  %742 = vmatmul.mubr.f32.gmra.mxu0 %v675
  %v743 = vpop.f32.mrf.mxu0
  %v744 = vadd.f32 0.0, %v743
  %v745 = vpop.f32.mrf.mxu0
  %746 = vdwg.mxu0
  %v747 = vadd.f32 %v328, %v744
  %v748 = vxor.u32 %v747, 2147483648
  %v749 = vmul.f32 %v748, 1.442695
  %v750 = vpow.pop %v749
  %v751 = vadd.f32 %v750, 1.0
  %v752 = vrcp.pop %v751
  %v753 = vmul.f32 1.0, %v752
  %v754 = vtanh.pop %v747
  %v755 = vmul.f32 %v753, %v665
  %757 = vrot.lane.b32.xlu0 %v754, 32
  %v758 = vpop.permute.xlu0 %757
  %v760 = vmul.f32 %v753, %v758
  %762 = vrot.lane.b32.xlu0 %v760, 32
  %v763 = vpop.permute.xlu0 %762
  %v765 = vadd.f32 %v755, %v763
  %v766 = vtanh.pop %v765
  %768 = vrot.lane.b32.xlu0 %v766, 32
  %v769 = vpop.permute.xlu0 %768
  %v771 = vmul.f32 %v753, %v769
  %773 = vrot.lane.b32.xlu0 %v771, 64
  %v774 = vpop.permute.xlu0 %773
  %v775 = vsel %vm146, %v774, 0
  %777 = vmatprep.subr.mxu0 0.0
  %778 = vmatpush1.msra.mxu0 0.0
  %779 = vmatprep.subr.mxu0 0.0
  %780 = vmatpush1.msra.mxu0 0.0
  %781 = vmatprep.subr.mxu0 0.0
  %782 = vmatpush1.msra.mxu0 0.0
  %783 = vmatprep.subr.mxu0 0.0
  %784 = vmatpush1.msra.mxu0 0.0
  %785 = vmatprep.subr.mxu0 0.0
  %786 = vmatpush1.msra.mxu0 0.0
  %787 = vmatprep.subr.mxu0 0.0
  %788 = vmatpush1.msra.mxu0 0.0
  %789 = vmatprep.subr.mxu0 0.0
  %790 = vmatpush1.msra.mxu0 0.0
  %791 = vmatprep.subr.mxu0 0.0
  %792 = vmatpush1.msra.mxu0 0.0
  %793 = vmatprep.subr.mxu0 0.0
  %794 = vmatpush1.msra.mxu0 0.0
  %795 = vmatprep.subr.mxu0 0.0
  %796 = vmatpush1.msra.mxu0 0.0
  %797 = vmatprep.subr.mxu0 0.0
  %798 = vmatpush1.msra.mxu0 0.0
  %799 = vmatprep.subr.mxu0 0.0
  %800 = vmatpush1.msra.mxu0 0.0
  %801 = vmatprep.subr.mxu0 0.0
  %802 = vmatpush1.msra.mxu0 %v369
  %803 = vmatprep.subr.mxu0 0.0
  %804 = vmatpush1.msra.mxu0 %v368
  %805 = vmatprep.subr.mxu0 0.0
  %806 = vmatpush1.msra.mxu0 %v367
  %807 = vmatprep.subr.mxu0 0.0
  %808 = vmatpush1.msra.mxu0 %v366
  %809 = vmatprep.subr.mxu0 0.0
  %810 = vmatpush2.msra.mxu0 0.0
  %811 = vmatprep.subr.mxu0 0.0
  %812 = vmatpush2.msra.mxu0 0.0
  %813 = vmatprep.subr.mxu0 0.0
  %814 = vmatpush2.msra.mxu0 0.0
  %815 = vmatprep.subr.mxu0 0.0
  %816 = vmatpush2.msra.mxu0 0.0
  %817 = vmatprep.subr.mxu0 0.0
  %818 = vmatpush2.msra.mxu0 0.0
  %819 = vmatprep.subr.mxu0 0.0
  %820 = vmatpush2.msra.mxu0 0.0
  %821 = vmatprep.subr.mxu0 0.0
  %822 = vmatpush2.msra.mxu0 0.0
  %823 = vmatprep.subr.mxu0 0.0
  %824 = vmatpush2.msra.mxu0 0.0
  %825 = vmatprep.subr.mxu0 0.0
  %826 = vmatpush2.msra.mxu0 0.0
  %827 = vmatprep.subr.mxu0 0.0
  %828 = vmatpush2.msra.mxu0 0.0
  %829 = vmatprep.subr.mxu0 0.0
  %830 = vmatpush2.msra.mxu0 0.0
  %831 = vmatprep.subr.mxu0 0.0
  %832 = vmatpush2.msra.mxu0 0.0
  %833 = vmatprep.subr.mxu0 0.0
  %834 = vmatpush2.msra.mxu0 0.0
  %835 = vmatprep.subr.mxu0 0.0
  %836 = vmatpush2.msra.mxu0 0.0
  %837 = vmatprep.subr.mxu0 0.0
  %838 = vmatpush2.msra.mxu0 0.0
  %839 = vmatprep.subr.mxu0 0.0
  %840 = vmatpush2.msra.mxu0 0.0
  %841 = vmatprep.mubr.f32.mxu0 0.0
  %842 = vmatmul.mubr.f32.gmra.mxu0 %v775
  %v843 = vpop.f32.mrf.mxu0
  %v844 = vadd.f32 0.0, %v843
  %v845 = vpop.f32.mrf.mxu0
  %846 = vdwg.mxu0
  %v847 = vadd.f32 %v333, %v844
  %v848 = vxor.u32 %v847, 2147483648
  %v849 = vmul.f32 %v848, 1.442695
  %v850 = vpow.pop %v849
  %v851 = vadd.f32 %v850, 1.0
  %v852 = vrcp.pop %v851
  %v853 = vmul.f32 1.0, %v852
  %v854 = vtanh.pop %v847
  %v855 = vmul.f32 %v853, %v765
  %857 = vrot.lane.b32.xlu0 %v854, 32
  %v858 = vpop.permute.xlu0 %857
  %v860 = vmul.f32 %v853, %v858
  %862 = vrot.lane.b32.xlu0 %v860, 32
  %v863 = vpop.permute.xlu0 %862
  %v865 = vadd.f32 %v855, %v863
  %v866 = vtanh.pop %v865
  %868 = vrot.lane.b32.xlu0 %v866, 32
  %v869 = vpop.permute.xlu0 %868
  %v871 = vmul.f32 %v853, %v869
  %873 = vrot.lane.b32.xlu0 %v871, 64
  %v874 = vpop.permute.xlu0 %873
  %v875 = vsel %vm146, %v874, 0
  %877 = vmatprep.subr.mxu0 0.0
  %878 = vmatpush1.msra.mxu0 0.0
  %879 = vmatprep.subr.mxu0 0.0
  %880 = vmatpush1.msra.mxu0 0.0
  %881 = vmatprep.subr.mxu0 0.0
  %882 = vmatpush1.msra.mxu0 0.0
  %883 = vmatprep.subr.mxu0 0.0
  %884 = vmatpush1.msra.mxu0 0.0
  %885 = vmatprep.subr.mxu0 0.0
  %886 = vmatpush1.msra.mxu0 0.0
  %887 = vmatprep.subr.mxu0 0.0
  %888 = vmatpush1.msra.mxu0 0.0
  %889 = vmatprep.subr.mxu0 0.0
  %890 = vmatpush1.msra.mxu0 0.0
  %891 = vmatprep.subr.mxu0 0.0
  %892 = vmatpush1.msra.mxu0 0.0
  %893 = vmatprep.subr.mxu0 0.0
  %894 = vmatpush1.msra.mxu0 0.0
  %895 = vmatprep.subr.mxu0 0.0
  %896 = vmatpush1.msra.mxu0 0.0
  %897 = vmatprep.subr.mxu0 0.0
  %898 = vmatpush1.msra.mxu0 0.0
  %899 = vmatprep.subr.mxu0 0.0
  %900 = vmatpush1.msra.mxu0 0.0
  %901 = vmatprep.subr.mxu0 0.0
  %902 = vmatpush1.msra.mxu0 %v369
  %903 = vmatprep.subr.mxu0 0.0
  %904 = vmatpush1.msra.mxu0 %v368
  %905 = vmatprep.subr.mxu0 0.0
  %906 = vmatpush1.msra.mxu0 %v367
  %907 = vmatprep.subr.mxu0 0.0
  %908 = vmatpush1.msra.mxu0 %v366
  %909 = vmatprep.subr.mxu0 0.0
  %910 = vmatpush2.msra.mxu0 0.0
  %911 = vmatprep.subr.mxu0 0.0
  %912 = vmatpush2.msra.mxu0 0.0
  %913 = vmatprep.subr.mxu0 0.0
  %914 = vmatpush2.msra.mxu0 0.0
  %915 = vmatprep.subr.mxu0 0.0
  %916 = vmatpush2.msra.mxu0 0.0
  %917 = vmatprep.subr.mxu0 0.0
  %918 = vmatpush2.msra.mxu0 0.0
  %919 = vmatprep.subr.mxu0 0.0
  %920 = vmatpush2.msra.mxu0 0.0
  %921 = vmatprep.subr.mxu0 0.0
  %922 = vmatpush2.msra.mxu0 0.0
  %923 = vmatprep.subr.mxu0 0.0
  %924 = vmatpush2.msra.mxu0 0.0
  %925 = vmatprep.subr.mxu0 0.0
  %926 = vmatpush2.msra.mxu0 0.0
  %927 = vmatprep.subr.mxu0 0.0
  %928 = vmatpush2.msra.mxu0 0.0
  %929 = vmatprep.subr.mxu0 0.0
  %930 = vmatpush2.msra.mxu0 0.0
  %931 = vmatprep.subr.mxu0 0.0
  %932 = vmatpush2.msra.mxu0 0.0
  %933 = vmatprep.subr.mxu0 0.0
  %934 = vmatpush2.msra.mxu0 0.0
  %935 = vmatprep.subr.mxu0 0.0
  %936 = vmatpush2.msra.mxu0 0.0
  %937 = vmatprep.subr.mxu0 0.0
  %938 = vmatpush2.msra.mxu0 0.0
  %939 = vmatprep.subr.mxu0 0.0
  %940 = vmatpush2.msra.mxu0 0.0
  %941 = vmatprep.mubr.f32.mxu0 0.0
  %942 = vmatmul.mubr.f32.gmra.mxu0 %v875
  %v943 = vpop.f32.mrf.mxu0
  %v944 = vadd.f32 0.0, %v943
  %v945 = vpop.f32.mrf.mxu0
  %946 = vdwg.mxu0
  %v947 = vadd.f32 %v338, %v944
  %v948 = vxor.u32 %v947, 2147483648
  %v949 = vmul.f32 %v948, 1.442695
  %v950 = vpow.pop %v949
  %v951 = vadd.f32 %v950, 1.0
  %v952 = vrcp.pop %v951
  %v953 = vmul.f32 1.0, %v952
  %v954 = vtanh.pop %v947
  %v955 = vmul.f32 %v953, %v865
  %957 = vrot.lane.b32.xlu0 %v954, 32
  %v958 = vpop.permute.xlu0 %957
  %v960 = vmul.f32 %v953, %v958
  %962 = vrot.lane.b32.xlu0 %v960, 32
  %v963 = vpop.permute.xlu0 %962
  %v965 = vadd.f32 %v955, %v963
  %v966 = vtanh.pop %v965
  %968 = vrot.lane.b32.xlu0 %v966, 32
  %v969 = vpop.permute.xlu0 %968
  %v971 = vmul.f32 %v953, %v969
  %973 = vrot.lane.b32.xlu0 %v971, 64
  %v974 = vpop.permute.xlu0 %973
  %v975 = vsel %vm146, %v974, 0
  %977 = vmatprep.subr.mxu0 0.0
  %978 = vmatpush1.msra.mxu0 0.0
  %979 = vmatprep.subr.mxu0 0.0
  %980 = vmatpush1.msra.mxu0 0.0
  %981 = vmatprep.subr.mxu0 0.0
  %982 = vmatpush1.msra.mxu0 0.0
  %983 = vmatprep.subr.mxu0 0.0
  %984 = vmatpush1.msra.mxu0 0.0
  %985 = vmatprep.subr.mxu0 0.0
  %986 = vmatpush1.msra.mxu0 0.0
  %987 = vmatprep.subr.mxu0 0.0
  %988 = vmatpush1.msra.mxu0 0.0
  %989 = vmatprep.subr.mxu0 0.0
  %990 = vmatpush1.msra.mxu0 0.0
  %991 = vmatprep.subr.mxu0 0.0
  %992 = vmatpush1.msra.mxu0 0.0
  %993 = vmatprep.subr.mxu0 0.0
  %994 = vmatpush1.msra.mxu0 0.0
  %995 = vmatprep.subr.mxu0 0.0
  %996 = vmatpush1.msra.mxu0 0.0
  %997 = vmatprep.subr.mxu0 0.0
  %998 = vmatpush1.msra.mxu0 0.0
  %999 = vmatprep.subr.mxu0 0.0
  %1000 = vmatpush1.msra.mxu0 0.0
  %1001 = vmatprep.subr.mxu0 0.0
  %1002 = vmatpush1.msra.mxu0 %v369
  %1003 = vmatprep.subr.mxu0 0.0
  %1004 = vmatpush1.msra.mxu0 %v368
  %1005 = vmatprep.subr.mxu0 0.0
  %1006 = vmatpush1.msra.mxu0 %v367
  %1007 = vmatprep.subr.mxu0 0.0
  %1008 = vmatpush1.msra.mxu0 %v366
  %1009 = vmatprep.subr.mxu0 0.0
  %1010 = vmatpush2.msra.mxu0 0.0
  %1011 = vmatprep.subr.mxu0 0.0
  %1012 = vmatpush2.msra.mxu0 0.0
  %1013 = vmatprep.subr.mxu0 0.0
  %1014 = vmatpush2.msra.mxu0 0.0
  %1015 = vmatprep.subr.mxu0 0.0
  %1016 = vmatpush2.msra.mxu0 0.0
  %1017 = vmatprep.subr.mxu0 0.0
  %1018 = vmatpush2.msra.mxu0 0.0
  %1019 = vmatprep.subr.mxu0 0.0
  %1020 = vmatpush2.msra.mxu0 0.0
  %1021 = vmatprep.subr.mxu0 0.0
  %1022 = vmatpush2.msra.mxu0 0.0
  %1023 = vmatprep.subr.mxu0 0.0
  %1024 = vmatpush2.msra.mxu0 0.0
  %1025 = vmatprep.subr.mxu0 0.0
  %1026 = vmatpush2.msra.mxu0 0.0
  %1027 = vmatprep.subr.mxu0 0.0
  %1028 = vmatpush2.msra.mxu0 0.0
  %1029 = vmatprep.subr.mxu0 0.0
  %1030 = vmatpush2.msra.mxu0 0.0
  %1031 = vmatprep.subr.mxu0 0.0
  %1032 = vmatpush2.msra.mxu0 0.0
  %1033 = vmatprep.subr.mxu0 0.0
  %1034 = vmatpush2.msra.mxu0 0.0
  %1035 = vmatprep.subr.mxu0 0.0
  %1036 = vmatpush2.msra.mxu0 0.0
  %1037 = vmatprep.subr.mxu0 0.0
  %1038 = vmatpush2.msra.mxu0 0.0
  %1039 = vmatprep.subr.mxu0 0.0
  %1040 = vmatpush2.msra.mxu0 0.0
  %1041 = vmatprep.mubr.f32.mxu0 0.0
  %1042 = vmatmul.mubr.f32.gmra.mxu0 %v975
  %v1043 = vpop.f32.mrf.mxu0
  %v1044 = vadd.f32 0.0, %v1043
  %v1045 = vpop.f32.mrf.mxu0
  %1046 = vdwg.mxu0
  %v1047 = vadd.f32 %v343, %v1044
  %v1048 = vxor.u32 %v1047, 2147483648
  %v1049 = vmul.f32 %v1048, 1.442695
  %v1050 = vpow.pop %v1049
  %v1051 = vadd.f32 %v1050, 1.0
  %v1052 = vrcp.pop %v1051
  %v1053 = vmul.f32 1.0, %v1052
  %v1054 = vtanh.pop %v1047
  %v1055 = vmul.f32 %v1053, %v965
  %1057 = vrot.lane.b32.xlu0 %v1054, 32
  %v1058 = vpop.permute.xlu0 %1057
  %v1060 = vmul.f32 %v1053, %v1058
  %1062 = vrot.lane.b32.xlu0 %v1060, 32
  %v1063 = vpop.permute.xlu0 %1062
  %v1065 = vadd.f32 %v1055, %v1063
  %v1066 = vtanh.pop %v1065
  %1068 = vrot.lane.b32.xlu0 %v1066, 32
  %v1069 = vpop.permute.xlu0 %1068
  %v1071 = vmul.f32 %v1053, %v1069
  %1073 = vrot.lane.b32.xlu0 %v1071, 64
  %v1074 = vpop.permute.xlu0 %1073
  %v1075 = vsel %vm146, %v1074, 0
  %1077 = vmatprep.subr.mxu0 0.0
  %1078 = vmatpush1.msra.mxu0 0.0
  %1079 = vmatprep.subr.mxu0 0.0
  %1080 = vmatpush1.msra.mxu0 0.0
  %1081 = vmatprep.subr.mxu0 0.0
  %1082 = vmatpush1.msra.mxu0 0.0
  %1083 = vmatprep.subr.mxu0 0.0
  %1084 = vmatpush1.msra.mxu0 0.0
  %1085 = vmatprep.subr.mxu0 0.0
  %1086 = vmatpush1.msra.mxu0 0.0
  %1087 = vmatprep.subr.mxu0 0.0
  %1088 = vmatpush1.msra.mxu0 0.0
  %1089 = vmatprep.subr.mxu0 0.0
  %1090 = vmatpush1.msra.mxu0 0.0
  %1091 = vmatprep.subr.mxu0 0.0
  %1092 = vmatpush1.msra.mxu0 0.0
  %1093 = vmatprep.subr.mxu0 0.0
  %1094 = vmatpush1.msra.mxu0 0.0
  %1095 = vmatprep.subr.mxu0 0.0
  %1096 = vmatpush1.msra.mxu0 0.0
  %1097 = vmatprep.subr.mxu0 0.0
  %1098 = vmatpush1.msra.mxu0 0.0
  %1099 = vmatprep.subr.mxu0 0.0
  %1100 = vmatpush1.msra.mxu0 0.0
  %1101 = vmatprep.subr.mxu0 0.0
  %1102 = vmatpush1.msra.mxu0 %v369
  %1103 = vmatprep.subr.mxu0 0.0
  %1104 = vmatpush1.msra.mxu0 %v368
  %1105 = vmatprep.subr.mxu0 0.0
  %1106 = vmatpush1.msra.mxu0 %v367
  %1107 = vmatprep.subr.mxu0 0.0
  %1108 = vmatpush1.msra.mxu0 %v366
  %1109 = vmatprep.subr.mxu0 0.0
  %1110 = vmatpush2.msra.mxu0 0.0
  %1111 = vmatprep.subr.mxu0 0.0
  %1112 = vmatpush2.msra.mxu0 0.0
  %1113 = vmatprep.subr.mxu0 0.0
  %1114 = vmatpush2.msra.mxu0 0.0
  %1115 = vmatprep.subr.mxu0 0.0
  %1116 = vmatpush2.msra.mxu0 0.0
  %1117 = vmatprep.subr.mxu0 0.0
  %1118 = vmatpush2.msra.mxu0 0.0
  %1119 = vmatprep.subr.mxu0 0.0
  %1120 = vmatpush2.msra.mxu0 0.0
  %1121 = vmatprep.subr.mxu0 0.0
  %1122 = vmatpush2.msra.mxu0 0.0
  %1123 = vmatprep.subr.mxu0 0.0
  %1124 = vmatpush2.msra.mxu0 0.0
  %1125 = vmatprep.subr.mxu0 0.0
  %1126 = vmatpush2.msra.mxu0 0.0
  %1127 = vmatprep.subr.mxu0 0.0
  %1128 = vmatpush2.msra.mxu0 0.0
  %1129 = vmatprep.subr.mxu0 0.0
  %1130 = vmatpush2.msra.mxu0 0.0
  %1131 = vmatprep.subr.mxu0 0.0
  %1132 = vmatpush2.msra.mxu0 0.0
  %1133 = vmatprep.subr.mxu0 0.0
  %1134 = vmatpush2.msra.mxu0 0.0
  %1135 = vmatprep.subr.mxu0 0.0
  %1136 = vmatpush2.msra.mxu0 0.0
  %1137 = vmatprep.subr.mxu0 0.0
  %1138 = vmatpush2.msra.mxu0 0.0
  %1139 = vmatprep.subr.mxu0 0.0
  %1140 = vmatpush2.msra.mxu0 0.0
  %1141 = vmatprep.mubr.f32.mxu0 0.0
  %1142 = vmatmul.mubr.f32.gmra.mxu0 %v1075
  %v1143 = vpop.f32.mrf.mxu0
  %v1144 = vadd.f32 0.0, %v1143
  %v1145 = vpop.f32.mrf.mxu0
  %1146 = vdwg.mxu0
  %v1147 = vadd.f32 %v348, %v1144
  %v1148 = vxor.u32 %v1147, 2147483648
  %v1149 = vmul.f32 %v1148, 1.442695
  %v1150 = vpow.pop %v1149
  %v1151 = vadd.f32 %v1150, 1.0
  %v1152 = vrcp.pop %v1151
  %v1153 = vmul.f32 1.0, %v1152
  %v1154 = vtanh.pop %v1147
  %v1155 = vmul.f32 %v1153, %v1065
  %1157 = vrot.lane.b32.xlu0 %v1154, 32
  %v1158 = vpop.permute.xlu0 %1157
  %v1160 = vmul.f32 %v1153, %v1158
  %1162 = vrot.lane.b32.xlu0 %v1160, 32
  %v1163 = vpop.permute.xlu0 %1162
  %v1165 = vadd.f32 %v1155, %v1163
  %v1166 = vtanh.pop %v1165
  %1168 = vrot.lane.b32.xlu0 %v1166, 32
  %v1169 = vpop.permute.xlu0 %1168
  %v1171 = vmul.f32 %v1153, %v1169
  %1173 = vrot.lane.b32.xlu0 %v1171, 64
  %v1174 = vpop.permute.xlu0 %1173
  %v1175 = vsel %vm146, %v1174, 0
  %1177 = vmatprep.subr.mxu0 0.0
  %1178 = vmatpush1.msra.mxu0 0.0
  %1179 = vmatprep.subr.mxu0 0.0
  %1180 = vmatpush1.msra.mxu0 0.0
  %1181 = vmatprep.subr.mxu0 0.0
  %1182 = vmatpush1.msra.mxu0 0.0
  %1183 = vmatprep.subr.mxu0 0.0
  %1184 = vmatpush1.msra.mxu0 0.0
  %1185 = vmatprep.subr.mxu0 0.0
  %1186 = vmatpush1.msra.mxu0 0.0
  %1187 = vmatprep.subr.mxu0 0.0
  %1188 = vmatpush1.msra.mxu0 0.0
  %1189 = vmatprep.subr.mxu0 0.0
  %1190 = vmatpush1.msra.mxu0 0.0
  %1191 = vmatprep.subr.mxu0 0.0
  %1192 = vmatpush1.msra.mxu0 0.0
  %1193 = vmatprep.subr.mxu0 0.0
  %1194 = vmatpush1.msra.mxu0 0.0
  %1195 = vmatprep.subr.mxu0 0.0
  %1196 = vmatpush1.msra.mxu0 0.0
  %1197 = vmatprep.subr.mxu0 0.0
  %1198 = vmatpush1.msra.mxu0 0.0
  %1199 = vmatprep.subr.mxu0 0.0
  %1200 = vmatpush1.msra.mxu0 0.0
  %1201 = vmatprep.subr.mxu0 0.0
  %1202 = vmatpush1.msra.mxu0 %v373
  %1203 = vmatprep.subr.mxu0 0.0
  %1204 = vmatpush1.msra.mxu0 %v372
  %1205 = vmatprep.subr.mxu0 0.0
  %1206 = vmatpush1.msra.mxu0 %v371
  %1207 = vmatprep.subr.mxu0 0.0
  %1208 = vmatpush1.msra.mxu0 %v370
  %1209 = vmatprep.subr.mxu0 0.0
  %1210 = vmatpush2.msra.mxu0 0.0
  %1211 = vmatprep.subr.mxu0 0.0
  %1212 = vmatpush2.msra.mxu0 0.0
  %1213 = vmatprep.subr.mxu0 0.0
  %1214 = vmatpush2.msra.mxu0 0.0
  %1215 = vmatprep.subr.mxu0 0.0
  %1216 = vmatpush2.msra.mxu0 0.0
  %1217 = vmatprep.subr.mxu0 0.0
  %1218 = vmatpush2.msra.mxu0 0.0
  %1219 = vmatprep.subr.mxu0 0.0
  %1220 = vmatpush2.msra.mxu0 0.0
  %1221 = vmatprep.subr.mxu0 0.0
  %1222 = vmatpush2.msra.mxu0 0.0
  %1223 = vmatprep.subr.mxu0 0.0
  %1224 = vmatpush2.msra.mxu0 0.0
  %1225 = vmatprep.subr.mxu0 0.0
  %1226 = vmatpush2.msra.mxu0 0.0
  %1227 = vmatprep.subr.mxu0 0.0
  %1228 = vmatpush2.msra.mxu0 0.0
  %1229 = vmatprep.subr.mxu0 0.0
  %1230 = vmatpush2.msra.mxu0 0.0
  %1231 = vmatprep.subr.mxu0 0.0
  %1232 = vmatpush2.msra.mxu0 0.0
  %1233 = vmatprep.subr.mxu0 0.0
  %1234 = vmatpush2.msra.mxu0 0.0
  %1235 = vmatprep.subr.mxu0 0.0
  %1236 = vmatpush2.msra.mxu0 0.0
  %1237 = vmatprep.subr.mxu0 0.0
  %1238 = vmatpush2.msra.mxu0 0.0
  %1239 = vmatprep.subr.mxu0 0.0
  %1240 = vmatpush2.msra.mxu0 0.0
  %1241 = vmatprep.mubr.f32.mxu0 0.0
  %1242 = vmatmul.mubr.f32.gmra.mxu0 %v1175
  %v1243 = vpop.f32.mrf.mxu0
  %v1244 = vadd.f32 0.0, %v1243
  %v1245 = vpop.f32.mrf.mxu0
  %1246 = vdwg.mxu0
  %v1247 = vadd.f32 %v352, %v1244
  %v1248 = vxor.u32 %v1247, 2147483648
  %v1249 = vmul.f32 %v1248, 1.442695
  %v1250 = vpow.pop %v1249
  %v1251 = vadd.f32 %v1250, 1.0
  %v1252 = vrcp.pop %v1251
  %v1253 = vmul.f32 1.0, %v1252
  %v1254 = vtanh.pop %v1247
  %v1255 = vmul.f32 %v1253, %v1165
  %1257 = vrot.lane.b32.xlu0 %v1254, 32
  %v1258 = vpop.permute.xlu0 %1257
  %v1260 = vmul.f32 %v1253, %v1258
  %1262 = vrot.lane.b32.xlu0 %v1260, 32
  %v1263 = vpop.permute.xlu0 %1262
  %v1265 = vadd.f32 %v1255, %v1263
  %v1266 = vtanh.pop %v1265
  %1268 = vrot.lane.b32.xlu0 %v1266, 32
  %v1269 = vpop.permute.xlu0 %1268
  %v1271 = vmul.f32 %v1253, %v1269
  %1273 = vrot.lane.b32.xlu0 %v1271, 64
  %v1274 = vpop.permute.xlu0 %1273
  %v1275 = vsel %vm146, %v1274, 0
  %1277 = vmatprep.subr.mxu0 0.0
  %1278 = vmatpush1.msra.mxu0 0.0
  %1279 = vmatprep.subr.mxu0 0.0
  %1280 = vmatpush1.msra.mxu0 0.0
  %1281 = vmatprep.subr.mxu0 0.0
  %1282 = vmatpush1.msra.mxu0 0.0
  %1283 = vmatprep.subr.mxu0 0.0
  %1284 = vmatpush1.msra.mxu0 0.0
  %1285 = vmatprep.subr.mxu0 0.0
  %1286 = vmatpush1.msra.mxu0 0.0
  %1287 = vmatprep.subr.mxu0 0.0
  %1288 = vmatpush1.msra.mxu0 0.0
  %1289 = vmatprep.subr.mxu0 0.0
  %1290 = vmatpush1.msra.mxu0 0.0
  %1291 = vmatprep.subr.mxu0 0.0
  %1292 = vmatpush1.msra.mxu0 0.0
  %1293 = vmatprep.subr.mxu0 0.0
  %1294 = vmatpush1.msra.mxu0 0.0
  %1295 = vmatprep.subr.mxu0 0.0
  %1296 = vmatpush1.msra.mxu0 0.0
  %1297 = vmatprep.subr.mxu0 0.0
  %1298 = vmatpush1.msra.mxu0 0.0
  %1299 = vmatprep.subr.mxu0 0.0
  %1300 = vmatpush1.msra.mxu0 0.0
  %1301 = vmatprep.subr.mxu0 0.0
  %1302 = vmatpush1.msra.mxu0 %v373
  %1303 = vmatprep.subr.mxu0 0.0
  %1304 = vmatpush1.msra.mxu0 %v372
  %1305 = vmatprep.subr.mxu0 0.0
  %1306 = vmatpush1.msra.mxu0 %v371
  %1307 = vmatprep.subr.mxu0 0.0
  %1308 = vmatpush1.msra.mxu0 %v370
  %1309 = vmatprep.subr.mxu0 0.0
  %1310 = vmatpush2.msra.mxu0 0.0
  %1311 = vmatprep.subr.mxu0 0.0
  %1312 = vmatpush2.msra.mxu0 0.0
  %1313 = vmatprep.subr.mxu0 0.0
  %1314 = vmatpush2.msra.mxu0 0.0
  %1315 = vmatprep.subr.mxu0 0.0
  %1316 = vmatpush2.msra.mxu0 0.0
  %1317 = vmatprep.subr.mxu0 0.0
  %1318 = vmatpush2.msra.mxu0 0.0
  %1319 = vmatprep.subr.mxu0 0.0
  %1320 = vmatpush2.msra.mxu0 0.0
  %1321 = vmatprep.subr.mxu0 0.0
  %1322 = vmatpush2.msra.mxu0 0.0
  %1323 = vmatprep.subr.mxu0 0.0
  %1324 = vmatpush2.msra.mxu0 0.0
  %1325 = vmatprep.subr.mxu0 0.0
  %1326 = vmatpush2.msra.mxu0 0.0
  %1327 = vmatprep.subr.mxu0 0.0
  %1328 = vmatpush2.msra.mxu0 0.0
  %1329 = vmatprep.subr.mxu0 0.0
  %1330 = vmatpush2.msra.mxu0 0.0
  %1331 = vmatprep.subr.mxu0 0.0
  %1332 = vmatpush2.msra.mxu0 0.0
  %1333 = vmatprep.subr.mxu0 0.0
  %1334 = vmatpush2.msra.mxu0 0.0
  %1335 = vmatprep.subr.mxu0 0.0
  %1336 = vmatpush2.msra.mxu0 0.0
  %1337 = vmatprep.subr.mxu0 0.0
  %1338 = vmatpush2.msra.mxu0 0.0
  %1339 = vmatprep.subr.mxu0 0.0
  %1340 = vmatpush2.msra.mxu0 0.0
  %1341 = vmatprep.mubr.f32.mxu0 0.0
  %1342 = vmatmul.mubr.f32.gmra.mxu0 %v1275
  %v1343 = vpop.f32.mrf.mxu0
  %v1344 = vadd.f32 0.0, %v1343
  %v1345 = vpop.f32.mrf.mxu0
  %1346 = vdwg.mxu0
  %v1347 = vadd.f32 %v357, %v1344
  %v1348 = vxor.u32 %v1347, 2147483648
  %v1349 = vmul.f32 %v1348, 1.442695
  %v1350 = vpow.pop %v1349
  %v1351 = vadd.f32 %v1350, 1.0
  %v1352 = vrcp.pop %v1351
  %v1353 = vmul.f32 1.0, %v1352
  %v1354 = vtanh.pop %v1347
  %v1355 = vmul.f32 %v1353, %v1265
  %1357 = vrot.lane.b32.xlu0 %v1354, 32
  %v1358 = vpop.permute.xlu0 %1357
  %v1360 = vmul.f32 %v1353, %v1358
  %1362 = vrot.lane.b32.xlu0 %v1360, 32
  %v1363 = vpop.permute.xlu0 %1362
  %v1365 = vadd.f32 %v1355, %v1363
  %v1366 = vtanh.pop %v1365
  %1368 = vrot.lane.b32.xlu0 %v1366, 32
  %v1369 = vpop.permute.xlu0 %1368
  %v1371 = vmul.f32 %v1353, %v1369
  %1373 = vrot.lane.b32.xlu0 %v1371, 64
  %v1374 = vpop.permute.xlu0 %1373
  %v1375 = vsel %vm146, %v1374, 0
  %1377 = vmatprep.subr.mxu0 0.0
  %1378 = vmatpush1.msra.mxu0 0.0
  %1379 = vmatprep.subr.mxu0 0.0
  %1380 = vmatpush1.msra.mxu0 0.0
  %1381 = vmatprep.subr.mxu0 0.0
  %1382 = vmatpush1.msra.mxu0 0.0
  %1383 = vmatprep.subr.mxu0 0.0
  %1384 = vmatpush1.msra.mxu0 0.0
  %1385 = vmatprep.subr.mxu0 0.0
  %1386 = vmatpush1.msra.mxu0 0.0
  %1387 = vmatprep.subr.mxu0 0.0
  %1388 = vmatpush1.msra.mxu0 0.0
  %1389 = vmatprep.subr.mxu0 0.0
  %1390 = vmatpush1.msra.mxu0 0.0
  %1391 = vmatprep.subr.mxu0 0.0
  %1392 = vmatpush1.msra.mxu0 0.0
  %1393 = vmatprep.subr.mxu0 0.0
  %1394 = vmatpush1.msra.mxu0 0.0
  %1395 = vmatprep.subr.mxu0 0.0
  %1396 = vmatpush1.msra.mxu0 0.0
  %1397 = vmatprep.subr.mxu0 0.0
  %1398 = vmatpush1.msra.mxu0 0.0
  %1399 = vmatprep.subr.mxu0 0.0
  %1400 = vmatpush1.msra.mxu0 0.0
  %1401 = vmatprep.subr.mxu0 0.0
  %1402 = vmatpush1.msra.mxu0 %v373
  %1403 = vmatprep.subr.mxu0 0.0
  %1404 = vmatpush1.msra.mxu0 %v372
  %1405 = vmatprep.subr.mxu0 0.0
  %1406 = vmatpush1.msra.mxu0 %v371
  %1407 = vmatprep.subr.mxu0 0.0
  %1408 = vmatpush1.msra.mxu0 %v370
  %1409 = vmatprep.subr.mxu0 0.0
  %1410 = vmatpush2.msra.mxu0 0.0
  %1411 = vmatprep.subr.mxu0 0.0
  %1412 = vmatpush2.msra.mxu0 0.0
  %1413 = vmatprep.subr.mxu0 0.0
  %1414 = vmatpush2.msra.mxu0 0.0
  %1415 = vmatprep.subr.mxu0 0.0
  %1416 = vmatpush2.msra.mxu0 0.0
  %1417 = vmatprep.subr.mxu0 0.0
  %1418 = vmatpush2.msra.mxu0 0.0
  %1419 = vmatprep.subr.mxu0 0.0
  %1420 = vmatpush2.msra.mxu0 0.0
  %1421 = vmatprep.subr.mxu0 0.0
  %1422 = vmatpush2.msra.mxu0 0.0
  %1423 = vmatprep.subr.mxu0 0.0
  %1424 = vmatpush2.msra.mxu0 0.0
  %1425 = vmatprep.subr.mxu0 0.0
  %1426 = vmatpush2.msra.mxu0 0.0
  %1427 = vmatprep.subr.mxu0 0.0
  %1428 = vmatpush2.msra.mxu0 0.0
  %1429 = vmatprep.subr.mxu0 0.0
  %1430 = vmatpush2.msra.mxu0 0.0
  %1431 = vmatprep.subr.mxu0 0.0
  %1432 = vmatpush2.msra.mxu0 0.0
  %1433 = vmatprep.subr.mxu0 0.0
  %1434 = vmatpush2.msra.mxu0 0.0
  %1435 = vmatprep.subr.mxu0 0.0
  %1436 = vmatpush2.msra.mxu0 0.0
  %1437 = vmatprep.subr.mxu0 0.0
  %1438 = vmatpush2.msra.mxu0 0.0
  %1439 = vmatprep.subr.mxu0 0.0
  %1440 = vmatpush2.msra.mxu0 0.0
  %1441 = vmatprep.mubr.f32.mxu0 0.0
  %1442 = vmatmul.mubr.f32.gmra.mxu0 %v1375
  %v1443 = vpop.f32.mrf.mxu0
  %v1444 = vadd.f32 0.0, %v1443
  %v1445 = vpop.f32.mrf.mxu0
  %1446 = vdwg.mxu0
  %v1447 = vadd.f32 %v362, %v1444
  %v1448 = vxor.u32 %v1447, 2147483648
  %v1449 = vmul.f32 %v1448, 1.442695
  %v1450 = vpow.pop %v1449
  %v1451 = vadd.f32 %v1450, 1.0
  %v1452 = vrcp.pop %v1451
  %v1453 = vmul.f32 1.0, %v1452
  %v1454 = vtanh.pop %v1447
  %v1455 = vmul.f32 %v1453, %v1365
  %1457 = vrot.lane.b32.xlu0 %v1454, 32
  %v1458 = vpop.permute.xlu0 %1457
  %v1460 = vmul.f32 %v1453, %v1458
  %1462 = vrot.lane.b32.xlu0 %v1460, 32
  %v1463 = vpop.permute.xlu0 %1462
  %v1465 = vadd.f32 %v1455, %v1463
  %v1466 = vtanh.pop %v1465
  %1468 = vrot.lane.b32.xlu0 %v1466, 32
  %v1469 = vpop.permute.xlu0 %1468
  %v1471 = vmul.f32 %v1453, %v1469
  %1473 = vrot.lane.b32.xlu0 %v1471, 64
  %v1474 = vpop.permute.xlu0 %1473
  %v1475 = vsel %vm146, %v1474, 0
  %1477 = vmatprep.subr.mxu0 0.0
  %1478 = vmatpush1.msra.mxu0 0.0
  %1479 = vmatprep.subr.mxu0 0.0
  %1480 = vmatpush1.msra.mxu0 0.0
  %1481 = vmatprep.subr.mxu0 0.0
  %1482 = vmatpush1.msra.mxu0 0.0
  %1483 = vmatprep.subr.mxu0 0.0
  %1484 = vmatpush1.msra.mxu0 0.0
  %1485 = vmatprep.subr.mxu0 0.0
  %1486 = vmatpush1.msra.mxu0 0.0
  %1487 = vmatprep.subr.mxu0 0.0
  %1488 = vmatpush1.msra.mxu0 0.0
  %1489 = vmatprep.subr.mxu0 0.0
  %1490 = vmatpush1.msra.mxu0 0.0
  %1491 = vmatprep.subr.mxu0 0.0
  %1492 = vmatpush1.msra.mxu0 0.0
  %1493 = vmatprep.subr.mxu0 0.0
  %1494 = vmatpush1.msra.mxu0 0.0
  %1495 = vmatprep.subr.mxu0 0.0
  %1496 = vmatpush1.msra.mxu0 0.0
  %1497 = vmatprep.subr.mxu0 0.0
  %1498 = vmatpush1.msra.mxu0 0.0
  %1499 = vmatprep.subr.mxu0 0.0
  %1500 = vmatpush1.msra.mxu0 0.0
  %1501 = vmatprep.subr.mxu0 0.0
  %1502 = vmatpush1.msra.mxu0 %v373
  %1503 = vmatprep.subr.mxu0 0.0
  %1504 = vmatpush1.msra.mxu0 %v372
  %1505 = vmatprep.subr.mxu0 0.0
  %1506 = vmatpush1.msra.mxu0 %v371
  %1507 = vmatprep.subr.mxu0 0.0
  %1508 = vmatpush1.msra.mxu0 %v370
  %1509 = vmatprep.subr.mxu0 0.0
  %1510 = vmatpush2.msra.mxu0 0.0
  %1511 = vmatprep.subr.mxu0 0.0
  %1512 = vmatpush2.msra.mxu0 0.0
  %1513 = vmatprep.subr.mxu0 0.0
  %1514 = vmatpush2.msra.mxu0 0.0
  %1515 = vmatprep.subr.mxu0 0.0
  %1516 = vmatpush2.msra.mxu0 0.0
  %1517 = vmatprep.subr.mxu0 0.0
  %1518 = vmatpush2.msra.mxu0 0.0
  %1519 = vmatprep.subr.mxu0 0.0
  %1520 = vmatpush2.msra.mxu0 0.0
  %1521 = vmatprep.subr.mxu0 0.0
  %1522 = vmatpush2.msra.mxu0 0.0
  %1523 = vmatprep.subr.mxu0 0.0
  %1524 = vmatpush2.msra.mxu0 0.0
  %1525 = vmatprep.subr.mxu0 0.0
  %1526 = vmatpush2.msra.mxu0 0.0
  %1527 = vmatprep.subr.mxu0 0.0
  %1528 = vmatpush2.msra.mxu0 0.0
  %1529 = vmatprep.subr.mxu0 0.0
  %1530 = vmatpush2.msra.mxu0 0.0
  %1531 = vmatprep.subr.mxu0 0.0
  %1532 = vmatpush2.msra.mxu0 0.0
  %1533 = vmatprep.subr.mxu0 0.0
  %1534 = vmatpush2.msra.mxu0 0.0
  %1535 = vmatprep.subr.mxu0 0.0
  %1536 = vmatpush2.msra.mxu0 0.0
  %1537 = vmatprep.subr.mxu0 0.0
  %1538 = vmatpush2.msra.mxu0 0.0
  %1539 = vmatprep.subr.mxu0 0.0
  %1540 = vmatpush2.msra.mxu0 0.0
  %1541 = vmatprep.mubr.f32.mxu0 0.0
  %1542 = vmatmul.mubr.f32.gmra.mxu0 %v1475
  %v1543 = vpop.f32.mrf.mxu0
  %v1544 = vadd.f32 0.0, %v1543
  %v1545 = vpop.f32.mrf.mxu0
  %1546 = vdwg.mxu0
  %v1547 = vadd.f32 %v365, %v1544
  %v1548 = vxor.u32 %v1547, 2147483648
  %v1549 = vmul.f32 %v1548, 1.442695
  %v1550 = vpow.pop %v1549
  %v1551 = vadd.f32 %v1550, 1.0
  %v1552 = vrcp.pop %v1551
  %v1553 = vmul.f32 1.0, %v1552
  %v1554 = vtanh.pop %v1547
  %v1555 = vmul.f32 %v1553, %v1465
  %1557 = vrot.lane.b32.xlu0 %v1554, 32
  %v1558 = vpop.permute.xlu0 %1557
  %v1560 = vmul.f32 %v1553, %v1558
  %1562 = vrot.lane.b32.xlu0 %v1560, 32
  %v1563 = vpop.permute.xlu0 %1562
  %v1565 = vadd.f32 %v1555, %v1563
  %v1566 = vtanh.pop %v1565
  %1568 = vrot.lane.b32.xlu0 %v1566, 32
  %v1569 = vpop.permute.xlu0 %1568
  %v1571 = vmul.f32 %v1553, %v1569
  %1573 = vrot.lane.b32.xlu0 %v1371, 96
  %v1574 = vpop.permute.xlu0 %1573
  %1577 = vrot.lane.b32.xlu0 %v1571, 32
  %v1578 = vpop.permute.xlu0 %1577
  %v1580 = vsel %vm146, %v1274, %v1574
  %vm1581 = vcmask 523264
  %v1582 = vsel %vm1581, %v1580, %v1471
  %vm1583 = vcmask 785408
  %v1584 = vsel %vm1583, %v1582, %v1578
  %v1585 = vld [vmem:[%s10] sm:$0xff]
  %v1586 = vld [vmem:[%s10 + $0x8] sm:$0xff]
  %v1587 = vld [vmem:[%s10 + $0x10] sm:$0xff]
  %v1588 = vld [vmem:[%s10 + $0x18] sm:$0xff]
  %v1589 = vld [vmem:[%s10 + $0x20] sm:$0xff]
  %v1590 = vld [vmem:[%s10 + $0x28] sm:$0xff]
  %v1591 = vld [vmem:[%s10 + $0x30] sm:$0xff]
  %v1592 = vld [vmem:[%s10 + $0x38] sm:$0xff]
  %v1593 = vld [vmem:[%s10 + $0x40] sm:$0xff]
  %v1594 = vld [vmem:[%s10 + $0x48] sm:$0xff]
  %v1595 = vld [vmem:[%s10 + $0x50] sm:$0xff]
  %v1596 = vld [vmem:[%s10 + $0x58] sm:$0xff]
  %v1597 = vld [vmem:[%s10 + $0x60] sm:$0xff]
  %v1598 = vld [vmem:[%s10 + $0x68] sm:$0xff]
  %v1599 = vld [vmem:[%s10 + $0x70] sm:$0xff]
  %v1600 = vld [vmem:[%s10 + $0x78] sm:$0xff]
  %v1601 = vld [vmem:[%s11] sm:$0x1]
  %v1603 = vlaneseq
  %v1604 = vshrl.u32 %v1603, 7
  %v1605 = vsub.s32 0, %v1604
  %v1606 = vrot.slane %v1601, %v1605
  %1608 = vmatprep.subr.mxu0 0.0
  %1609 = vmatpush1.msra.mxu0 %v1600
  %1610 = vmatprep.subr.mxu0 0.0
  %1611 = vmatpush1.msra.mxu0 %v1599
  %1612 = vmatprep.subr.mxu0 0.0
  %1613 = vmatpush1.msra.mxu0 %v1598
  %1614 = vmatprep.subr.mxu0 0.0
  %1615 = vmatpush1.msra.mxu0 %v1597
  %1616 = vmatprep.subr.mxu0 0.0
  %1617 = vmatpush1.msra.mxu0 %v1596
  %1618 = vmatprep.subr.mxu0 0.0
  %1619 = vmatpush1.msra.mxu0 %v1595
  %1620 = vmatprep.subr.mxu0 0.0
  %1621 = vmatpush1.msra.mxu0 %v1594
  %1622 = vmatprep.subr.mxu0 0.0
  %1623 = vmatpush1.msra.mxu0 %v1593
  %1624 = vmatprep.subr.mxu0 0.0
  %1625 = vmatpush1.msra.mxu0 %v1592
  %1626 = vmatprep.subr.mxu0 0.0
  %1627 = vmatpush1.msra.mxu0 %v1591
  %1628 = vmatprep.subr.mxu0 0.0
  %1629 = vmatpush1.msra.mxu0 %v1590
  %1630 = vmatprep.subr.mxu0 0.0
  %1631 = vmatpush1.msra.mxu0 %v1589
  %1632 = vmatprep.subr.mxu0 0.0
  %1633 = vmatpush1.msra.mxu0 %v1588
  %1634 = vmatprep.subr.mxu0 0.0
  %1635 = vmatpush1.msra.mxu0 %v1587
  %1636 = vmatprep.subr.mxu0 0.0
  %1637 = vmatpush1.msra.mxu0 %v1586
  %1638 = vmatprep.subr.mxu0 0.0
  %1639 = vmatpush1.msra.mxu0 %v1585
  %1640 = vmatprep.subr.mxu0 0.0
  %1641 = vmatpush2.msra.mxu0 0.0
  %1642 = vmatprep.subr.mxu0 0.0
  %1643 = vmatpush2.msra.mxu0 0.0
  %1644 = vmatprep.subr.mxu0 0.0
  %1645 = vmatpush2.msra.mxu0 0.0
  %1646 = vmatprep.subr.mxu0 0.0
  %1647 = vmatpush2.msra.mxu0 0.0
  %1648 = vmatprep.subr.mxu0 0.0
  %1649 = vmatpush2.msra.mxu0 0.0
  %1650 = vmatprep.subr.mxu0 0.0
  %1651 = vmatpush2.msra.mxu0 0.0
  %1652 = vmatprep.subr.mxu0 0.0
  %1653 = vmatpush2.msra.mxu0 0.0
  %1654 = vmatprep.subr.mxu0 0.0
  %1655 = vmatpush2.msra.mxu0 0.0
  %1656 = vmatprep.subr.mxu0 0.0
  %1657 = vmatpush2.msra.mxu0 0.0
  %1658 = vmatprep.subr.mxu0 0.0
  %1659 = vmatpush2.msra.mxu0 0.0
  %1660 = vmatprep.subr.mxu0 0.0
  %1661 = vmatpush2.msra.mxu0 0.0
  %1662 = vmatprep.subr.mxu0 0.0
  %1663 = vmatpush2.msra.mxu0 0.0
  %1664 = vmatprep.subr.mxu0 0.0
  %1665 = vmatpush2.msra.mxu0 0.0
  %1666 = vmatprep.subr.mxu0 0.0
  %1667 = vmatpush2.msra.mxu0 0.0
  %1668 = vmatprep.subr.mxu0 0.0
  %1669 = vmatpush2.msra.mxu0 0.0
  %1670 = vmatprep.subr.mxu0 0.0
  %1671 = vmatpush2.msra.mxu0 0.0
  %1672 = vmatprep.mubr.f32.mxu0 0.0
  %1673 = vmatmul.mubr.f32.gmra.mxu0 %v1584
  %v1674 = vpop.f32.mrf.mxu0
  %v1675 = vadd.f32 %v1606, %v1674
  %v1676 = vpop.f32.mrf.mxu0
  %1677 = vdwg.mxu0
  %vm1678 = vcmask 254976
  %1679 = vst.msk [vmem:[%s12] sm:$0x3] %vm1678, %v1675
  // Predicated region
  $region50: #{generator_forward.1} parent=0 // pred_check
    _
  $region51: #{generator_forward.1} parent=0 // pred_check_branch
    %1681 = sbr.rel (0) target = $region53
  $region52: #{generator_forward.1} parent=0 // pred_region
    _
  $region53: #{generator_forward.1} parent=0 // pred_fallthru
    _
  // Predicated region
  $region54: #{generator_forward.1} parent=0 // pred_check
    _
  $region55: #{generator_forward.1} parent=0 // pred_check_branch
    %1683 = sbr.rel (0) target = $region57
  $region56: #{generator_forward.1} parent=0 // pred_region
    _
  $region57: #{generator_forward.1} parent=0 // pred_fallthru
    _

</llo_original>
